<compile_context>
chip_gen: v6e
topology: v6e:2x2x1
jax: 0.10.0
libtpu: 0.0.40
codegen_flags: <defaults>
</compile_context>

<pallas_src>
import functools

import numpy as np
import jax
import jax.numpy as jnp
from jax.experimental import pallas as pl
from jax.experimental.pallas import tpu as pltpu

_BN_EPS = 1e-5


# ----------------------------- Pallas kernel ------------------------------- #

def _coordconv_bn_relu_kernel(x_ref, w_ref, cb_ref, m_ref, g_ref, b_ref, o_ref,
                              sum_sc, ssq_sc, scale_sc, shift_sc, *, H, W, n_total):
    """One CoordConv(3x3, pad=1, no bias) -> BatchNorm(batch stats) -> ReLU block.

    Grid: (cout_blocks ["parallel"], phase {0: stats, 1: apply}, batch image).

    x_ref  : (1, Cin, (H+4)*W) bf16  H-padded (2 zero rows each side) flattened image slab
    w_ref  : (9, TCo, Cin)     bf16  conv weights per tap (kh*3+kw), real channels only
    cb_ref : (TCo, H*W)        f32   coord-channel conv contribution (batch independent)
    m_ref  : (2, H*W)          f32   column masks: row0 = (w != 0), row1 = (w != W-1)
    g_ref  : (TCo, 1)          f32   BN gamma
    b_ref  : (TCo, 1)          f32   BN beta
    o_ref  : (1, TCo, (H+4)*W) bf16  output slab (same padded layout as the input slab)
    *_sc   : (TCo, 1)          f32   persistent scratch (sum, sumsq, scale, shift)
    """
    phase = pl.program_id(1)
    img = pl.program_id(2)
    HW = H * W

    # --- CoordConv 3x3 over the real channels; the 9 taps are formed in-kernel via static
    # lane-offset slices of the H-padded slab.  Coord channels are folded into cb_ref.
    acc = cb_ref[...]                                     # (TCo, HW) f32
    for kw in range(3):
        part = None
        for kh in range(3):
            start = (kh + 1) * W + (kw - 1)               # static lane offset, always >= 0
            x_tap = x_ref[0, :, pl.ds(start, HW)]         # (Cin, HW) bf16
            d = jnp.dot(w_ref[kh * 3 + kw], x_tap,
                        preferred_element_type=jnp.float32)
            part = d if part is None else part + d
        if kw == 0:                                       # taps that crossed the left edge
            part = part * m_ref[0:1, :]
        elif kw == 2:                                     # ... and the right edge
            part = part * m_ref[1:2, :]
        acc = acc + part                                  # (TCo, HW) f32 pre-BN activation

    # --- Phase 0: accumulate per-channel batch statistics into tiny resident scratch.
    @pl.when(phase == 0)
    def _():
        @pl.when(img == 0)
        def _():
            sum_sc[...] = jnp.zeros_like(sum_sc)
            ssq_sc[...] = jnp.zeros_like(ssq_sc)
        sum_sc[...] += jnp.sum(acc, axis=1, keepdims=True)
        ssq_sc[...] += jnp.sum(acc * acc, axis=1, keepdims=True)

    # --- Phase 1: fold stats -> scale/shift once, then BN + ReLU and stream the slab out.
    @pl.when(phase == 1)
    def _():
        @pl.when(img == 0)
        def _():
            inv_n = 1.0 / float(n_total)
            mean = sum_sc[...] * inv_n
            # E[x^2] - E[x]^2 in f32; clamp guards the (mild) cancellation case.
            var = jnp.maximum(ssq_sc[...] * inv_n - mean * mean, 0.0)
            inv = jax.lax.rsqrt(var + _BN_EPS)
            scale_sc[...] = g_ref[...] * inv
            shift_sc[...] = b_ref[...] - mean * g_ref[...] * inv
        y = jnp.maximum(acc * scale_sc[...] + shift_sc[...], 0.0).astype(o_ref.dtype)
        zpad = jnp.zeros((y.shape[0], 2 * W), o_ref.dtype)
        # Store the full H-padded slab (zero pad rows) so the next block consumes it as-is.
        o_ref[0] = jnp.concatenate([zpad, y, zpad], axis=1)


# --------------------------------- Glue ------------------------------------ #

def _pick_cout_tile(cout):
    """Channel-block size: prefer >=2 blocks (v7x dual TensorCore) when an 8-aligned split
    exists; otherwise take the full channel dim (full-dim BlockSpec exception)."""
    for t in (128, 64, 32, 16, 8):
        if cout % t == 0 and cout // t >= 2:
            return t
    return cout


def _coord_image_nchw(H, W):
    """(1, 2, H, W) coordinate channels [xx, yy], matching the PyTorch AddCoords
    (including its asymmetric normalization: col idx / (H-1), row idx / (W-1))."""
    # TODO(synk): H == 1 or W == 1 divides by zero here (same as the PyTorch reference).
    xx = jnp.broadcast_to(jnp.arange(W, dtype=jnp.float32)[None, :], (H, W))
    yy = jnp.broadcast_to(jnp.arange(H, dtype=jnp.float32)[:, None], (H, W))
    xx = xx / (H - 1) * 2.0 - 1.0
    yy = yy / (W - 1) * 2.0 - 1.0
    return jnp.stack([xx, yy], axis=0)[None]


def _coordconv_bn_relu_block(x_slab, w_oihw, gamma, beta, H, W):
    """One fused CoordConv(3x3) -> BN -> ReLU block.

    x_slab: (B, Cin, (H+4)*W) bf16 H-padded per-image slabs.
    Returns (B, Cout, (H+4)*W) bf16 in the same slab layout (direct handoff to next block)."""
    B, Cin, Dpad = x_slab.shape
    assert Dpad == (H + 4) * W
    Cout = w_oihw.shape[0]
    HW = H * W
    TCo = _pick_cout_tile(Cout)
    ncb = Cout // TCo

    # Split the conv weight into real-channel taps (MXU) and coordinate-channel taps
    # (folded into a batch-independent bias map computed once per block, outside the grid).
    w_real = w_oihw[:, :Cin]                                      # (Cout, Cin, 3, 3)
    w_coord = w_oihw[:, Cin:]                                     # (Cout, 2, 3, 3)
    w_taps = jnp.transpose(w_real, (2, 3, 0, 1)).reshape(9, Cout, Cin).astype(jnp.bfloat16)
    coord_bias = jax.lax.conv_general_dilated(
        _coord_image_nchw(H, W), w_coord, window_strides=(1, 1),
        padding=((1, 1), (1, 1)),
        dimension_numbers=("NCHW", "OIHW", "NCHW")).reshape(Cout, HW)  # f32, no batch tiling

    # Column-edge masks for the in-kernel taps (row 0: w != 0, row 1: w != W-1).
    w_idx = jnp.arange(HW, dtype=jnp.int32) % W
    edge_masks = jnp.stack([w_idx != 0, w_idx != W - 1]).astype(jnp.float32)   # (2, HW)

    kernel = functools.partial(_coordconv_bn_relu_kernel, H=H, W=W, n_total=B * HW)

    return pl.pallas_call(
        kernel,
        out_shape=jax.ShapeDtypeStruct((B, Cout, Dpad), jnp.bfloat16),
        grid=(ncb, 2, B),
        in_specs=[
            pl.BlockSpec((1, Cin, Dpad), lambda c, p, b: (b, 0, 0)),     # per-image slab
            pl.BlockSpec((9, TCo, Cin), lambda c, p, b: (0, c, 0)),      # tap weights
            pl.BlockSpec((TCo, HW), lambda c, p, b: (c, 0)),             # coord-channel bias
            pl.BlockSpec((2, HW), lambda c, p, b: (0, 0)),               # edge masks
            pl.BlockSpec((TCo, 1), lambda c, p, b: (c, 0)),              # gamma
            pl.BlockSpec((TCo, 1), lambda c, p, b: (c, 0)),              # beta
        ],
        # b*p pins phase 0 to block 0 so never-written output buffers are never flushed;
        # phase 1 streams exactly one fully-written bf16 slab per image.
        out_specs=pl.BlockSpec((1, TCo, Dpad), lambda c, p, b: (b * p, c, 0)),
        scratch_shapes=[pltpu.VMEM((TCo, 1), jnp.float32)] * 4,
        compiler_params=pltpu.CompilerParams(
            # Channel blocks are fully independent (per-channel BN stats) -> "parallel";
            # the phase and batch axes carry the stats scratch -> "arbitrary".
            dimension_semantics=("parallel", "arbitrary", "arbitrary"),
            # Headroom on v7x (64 MiB physical); still a raise over v5e/v6e scoped defaults.
            vmem_limit_bytes=48 * 1024 * 1024,
        ),
    )(x_slab, w_taps, coord_bias, edge_masks,
      gamma.reshape(Cout, 1).astype(jnp.float32),
      beta.reshape(Cout, 1).astype(jnp.float32))


@jax.jit
def in_conv_forward(x_nchw, params):
    """InConv forward. x_nchw: (B, in_ch, H, W). Returns (B, out_ch, H, W) float32."""
    B, _, H, W = x_nchw.shape
    # Host-side prep is only an H-pad (+2 zero rows each side) and a flatten; no im2col.
    x = jnp.pad(x_nchw.astype(jnp.float32), ((0, 0), (0, 0), (2, 2), (0, 0)))
    x = x.reshape(B, x.shape[1], (H + 4) * W).astype(jnp.bfloat16)
    for (w, gamma, beta) in params:            # two CoordConv -> BN -> ReLU blocks
        x = _coordconv_bn_relu_block(x, w, gamma, beta, H, W)
    Cout = x.shape[1]
    y = x.reshape(B, Cout, H + 4, W)[:, :, 2:H + 2, :]
    return y.astype(jnp.float32)


# --------------------------- Pure-JAX reference ----------------------------- #

def _add_coords_nchw(x):
    B, _, H, W = x.shape
    xx = jnp.broadcast_to(
        jnp.arange(W, dtype=jnp.float32)[None, None, None, :], (B, 1, H, W))
    yy = jnp.broadcast_to(
        jnp.arange(H, dtype=jnp.float32)[None, None, :, None], (B, 1, H, W))
    xx = xx / (H - 1) * 2.0 - 1.0
    yy = yy / (W - 1) * 2.0 - 1.0
    return jnp.concatenate([x, xx, yy], axis=1)


def reference_forward(x_nchw, params):
    x = x_nchw.astype(jnp.float32)
    for (w, gamma, beta) in params:
        xc = _add_coords_nchw(x)
        y = jax.lax.conv_general_dilated(
            xc, w, window_strides=(1, 1), padding=((1, 1), (1, 1)),
            dimension_numbers=("NCHW", "OIHW", "NCHW"))
        mean = jnp.mean(y, axis=(0, 2, 3), keepdims=True)
        var = jnp.mean(jnp.square(y - mean), axis=(0, 2, 3), keepdims=True)
        y = (y - mean) * jax.lax.rsqrt(var + _BN_EPS)
        y = y * gamma.reshape(1, -1, 1, 1) + beta.reshape(1, -1, 1, 1)
        x = jnp.maximum(y, 0.0)
    return x


# ---------------------------------- Main ------------------------------------ #

if __name__ == "__main__":
    key = jax.random.PRNGKey(0)
    in_ch, out_ch = 4, 8
    B, H, W = 2, 16, 16

    k1, k2, k3, k4, k5, k6, kx = jax.random.split(key, 7)

    def conv_weight(k, cout, cin):
        bound = 1.0 / float(np.sqrt(cin * 9.0))       # kaiming-uniform-style bound
        return jax.random.uniform(k, (cout, cin, 3, 3), jnp.float32, -bound, bound)

    w1 = conv_weight(k1, out_ch, in_ch + 2)
    w2 = conv_weight(k2, out_ch, out_ch + 2)
    g1 = jax.random.uniform(k3, (out_ch,), jnp.float32, 0.5, 1.5)
    b1 = 0.1 * jax.random.normal(k4, (out_ch,), jnp.float32)
    g2 = jax.random.uniform(k5, (out_ch,), jnp.float32, 0.5, 1.5)
    b2 = 0.1 * jax.random.normal(k6, (out_ch,), jnp.float32)
    params = [(w1, g1, b1), (w2, g2, b2)]

    x = jax.random.normal(kx, (B, in_ch, H, W), jnp.float32)

    out = in_conv_forward(x, params)
    out = jax.block_until_ready(out)
    assert out.shape == (B, out_ch, H, W)

    ref = reference_forward(x, params)
    # Tolerance accommodates bf16 MXU feeds and the bf16 inter-block / output handoff;
    # all BN / ReLU / bias arithmetic stays f32 inside the kernel.
    np.testing.assert_allclose(np.asarray(out), np.asarray(ref),
                               rtol=5e-2, atol=5e-2)

    print("KERNEL_OK")
</pallas_src>

<mosaic_0001>
module attributes {stable_mosaic.version = 11 : i64} {
  func.func @_coordconv_bn_relu_kernel(%arg0: i32, %arg1: i32, %arg2: i32, %arg3: memref<1x8x320xbf16, #tpu.memory_space<vmem>>, %arg4: memref<9x8x8xbf16, #tpu.memory_space<vmem>>, %arg5: memref<8x256xf32, #tpu.memory_space<vmem>>, %arg6: memref<2x256xf32, #tpu.memory_space<vmem>>, %arg7: memref<8x1xf32, #tpu.memory_space<vmem>>, %arg8: memref<8x1xf32, #tpu.memory_space<vmem>>, %arg9: memref<1x8x320xbf16, #tpu.memory_space<vmem>>, %arg10: memref<8x1xf32, #tpu.memory_space<vmem>>, %arg11: memref<8x1xf32, #tpu.memory_space<vmem>>, %arg12: memref<8x1xf32, #tpu.memory_space<vmem>>, %arg13: memref<8x1xf32, #tpu.memory_space<vmem>>) attributes {dimension_semantics = [#tpu.dimension_semantics<parallel>, #tpu.dimension_semantics<arbitrary>, #tpu.dimension_semantics<arbitrary>], iteration_bounds = array<i64: 1, 2, 2>, scalar_prefetch = 0 : i64, scratch_operands = 4 : i64, tpu.core_type = #tpu.core_type<tc>, window_params = [{transform_indices = @transform_0, window_bounds = array<i64: 1, 8, 320>}, {transform_indices = @transform_1, window_bounds = array<i64: 9, 8, 8>}, {transform_indices = @transform_2, window_bounds = array<i64: 8, 256>}, {pipeline_mode = #tpu.pipeline_mode<synchronous>, transform_indices = @transform_3, window_bounds = array<i64: 2, 256>}, {transform_indices = @transform_4, window_bounds = array<i64: 8, 1>}, {transform_indices = @transform_5, window_bounds = array<i64: 8, 1>}, {transform_indices = @transform_6, window_bounds = array<i64: 1, 8, 320>}]} {
    %c0 = arith.constant 0 : index
    %c0_0 = arith.constant 0 : index
    %0 = vector.load %arg5[%c0, %c0_0] : memref<8x256xf32, #tpu.memory_space<vmem>>, vector<8x256xf32>
    %c0_1 = arith.constant 0 : index
    %c0_2 = arith.constant 0 : index
    %c15 = arith.constant 15 : index
    %1 = vector.load %arg3[%c0_1, %c0_2, %c15] : memref<1x8x320xbf16, #tpu.memory_space<vmem>>, vector<1x8x256xbf16>
    %2 = vector.shape_cast %1 : vector<1x8x256xbf16> to vector<8x256xbf16>
    %c0_3 = arith.constant 0 : index
    %c0_4 = arith.constant 0 : index
    %c0_5 = arith.constant 0 : index
    %3 = vector.load %arg4[%c0_3, %c0_4, %c0_5] : memref<9x8x8xbf16, #tpu.memory_space<vmem>>, vector<1x8x8xbf16>
    %4 = vector.shape_cast %3 : vector<1x8x8xbf16> to vector<8x8xbf16>
    %cst = arith.constant dense<0.000000e+00> : vector<8x256xf32>
    %5 = tpu.matmul %4, %2, %cst {dimension_numbers = #tpu.dot_dimension_numbers<[1], [0], [0], [1], [0, 0, 1, 1], [], []>} : vector<8x8xbf16>, vector<8x256xbf16>, vector<8x256xf32> -> vector<8x256xf32>
    %c0_6 = arith.constant 0 : index
    %c0_7 = arith.constant 0 : index
    %c31 = arith.constant 31 : index
    %6 = vector.load %arg3[%c0_6, %c0_7, %c31] : memref<1x8x320xbf16, #tpu.memory_space<vmem>>, vector<1x8x256xbf16>
    %7 = vector.shape_cast %6 : vector<1x8x256xbf16> to vector<8x256xbf16>
    %c3 = arith.constant 3 : index
    %c0_8 = arith.constant 0 : index
    %c0_9 = arith.constant 0 : index
    %8 = vector.load %arg4[%c3, %c0_8, %c0_9] : memref<9x8x8xbf16, #tpu.memory_space<vmem>>, vector<1x8x8xbf16>
    %9 = vector.shape_cast %8 : vector<1x8x8xbf16> to vector<8x8xbf16>
    %cst_10 = arith.constant dense<0.000000e+00> : vector<8x256xf32>
    %10 = tpu.matmul %9, %7, %cst_10 {dimension_numbers = #tpu.dot_dimension_numbers<[1], [0], [0], [1], [0, 0, 1, 1], [], []>} : vector<8x8xbf16>, vector<8x256xbf16>, vector<8x256xf32> -> vector<8x256xf32>
    %11 = arith.addf %5, %10 : vector<8x256xf32>
    %c0_11 = arith.constant 0 : index
    %c0_12 = arith.constant 0 : index
    %c47 = arith.constant 47 : index
    %12 = vector.load %arg3[%c0_11, %c0_12, %c47] : memref<1x8x320xbf16, #tpu.memory_space<vmem>>, vector<1x8x256xbf16>
    %13 = vector.shape_cast %12 : vector<1x8x256xbf16> to vector<8x256xbf16>
    %c6 = arith.constant 6 : index
    %c0_13 = arith.constant 0 : index
    %c0_14 = arith.constant 0 : index
    %14 = vector.load %arg4[%c6, %c0_13, %c0_14] : memref<9x8x8xbf16, #tpu.memory_space<vmem>>, vector<1x8x8xbf16>
    %15 = vector.shape_cast %14 : vector<1x8x8xbf16> to vector<8x8xbf16>
    %cst_15 = arith.constant dense<0.000000e+00> : vector<8x256xf32>
    %16 = tpu.matmul %15, %13, %cst_15 {dimension_numbers = #tpu.dot_dimension_numbers<[1], [0], [0], [1], [0, 0, 1, 1], [], []>} : vector<8x8xbf16>, vector<8x256xbf16>, vector<8x256xf32> -> vector<8x256xf32>
    %17 = arith.addf %11, %16 : vector<8x256xf32>
    %c0_16 = arith.constant 0 : index
    %c0_17 = arith.constant 0 : index
    %18 = vector.load %arg6[%c0_16, %c0_17] : memref<2x256xf32, #tpu.memory_space<vmem>>, vector<1x256xf32>
    %19 = vector.broadcast %18 : vector<1x256xf32> to vector<8x256xf32>
    %20 = arith.mulf %17, %19 : vector<8x256xf32>
    %21 = arith.addf %0, %20 : vector<8x256xf32>
    %c0_18 = arith.constant 0 : index
    %c0_19 = arith.constant 0 : index
    %c16 = arith.constant 16 : index
    %22 = vector.load %arg3[%c0_18, %c0_19, %c16] : memref<1x8x320xbf16, #tpu.memory_space<vmem>>, vector<1x8x256xbf16>
    %23 = vector.shape_cast %22 : vector<1x8x256xbf16> to vector<8x256xbf16>
    %c1 = arith.constant 1 : index
    %c0_20 = arith.constant 0 : index
    %c0_21 = arith.constant 0 : index
    %24 = vector.load %arg4[%c1, %c0_20, %c0_21] : memref<9x8x8xbf16, #tpu.memory_space<vmem>>, vector<1x8x8xbf16>
    %25 = vector.shape_cast %24 : vector<1x8x8xbf16> to vector<8x8xbf16>
    %cst_22 = arith.constant dense<0.000000e+00> : vector<8x256xf32>
    %26 = tpu.matmul %25, %23, %cst_22 {dimension_numbers = #tpu.dot_dimension_numbers<[1], [0], [0], [1], [0, 0, 1, 1], [], []>} : vector<8x8xbf16>, vector<8x256xbf16>, vector<8x256xf32> -> vector<8x256xf32>
    %c0_23 = arith.constant 0 : index
    %c0_24 = arith.constant 0 : index
    %c32 = arith.constant 32 : index
    %27 = vector.load %arg3[%c0_23, %c0_24, %c32] : memref<1x8x320xbf16, #tpu.memory_space<vmem>>, vector<1x8x256xbf16>
    %28 = vector.shape_cast %27 : vector<1x8x256xbf16> to vector<8x256xbf16>
    %c4 = arith.constant 4 : index
    %c0_25 = arith.constant 0 : index
    %c0_26 = arith.constant 0 : index
    %29 = vector.load %arg4[%c4, %c0_25, %c0_26] : memref<9x8x8xbf16, #tpu.memory_space<vmem>>, vector<1x8x8xbf16>
    %30 = vector.shape_cast %29 : vector<1x8x8xbf16> to vector<8x8xbf16>
    %cst_27 = arith.constant dense<0.000000e+00> : vector<8x256xf32>
    %31 = tpu.matmul %30, %28, %cst_27 {dimension_numbers = #tpu.dot_dimension_numbers<[1], [0], [0], [1], [0, 0, 1, 1], [], []>} : vector<8x8xbf16>, vector<8x256xbf16>, vector<8x256xf32> -> vector<8x256xf32>
    %32 = arith.addf %26, %31 : vector<8x256xf32>
    %c0_28 = arith.constant 0 : index
    %c0_29 = arith.constant 0 : index
    %c48 = arith.constant 48 : index
    %33 = vector.load %arg3[%c0_28, %c0_29, %c48] : memref<1x8x320xbf16, #tpu.memory_space<vmem>>, vector<1x8x256xbf16>
    %34 = vector.shape_cast %33 : vector<1x8x256xbf16> to vector<8x256xbf16>
    %c7 = arith.constant 7 : index
    %c0_30 = arith.constant 0 : index
    %c0_31 = arith.constant 0 : index
    %35 = vector.load %arg4[%c7, %c0_30, %c0_31] : memref<9x8x8xbf16, #tpu.memory_space<vmem>>, vector<1x8x8xbf16>
    %36 = vector.shape_cast %35 : vector<1x8x8xbf16> to vector<8x8xbf16>
    %cst_32 = arith.constant dense<0.000000e+00> : vector<8x256xf32>
    %37 = tpu.matmul %36, %34, %cst_32 {dimension_numbers = #tpu.dot_dimension_numbers<[1], [0], [0], [1], [0, 0, 1, 1], [], []>} : vector<8x8xbf16>, vector<8x256xbf16>, vector<8x256xf32> -> vector<8x256xf32>
    %38 = arith.addf %32, %37 : vector<8x256xf32>
    %39 = arith.addf %21, %38 : vector<8x256xf32>
    %c0_33 = arith.constant 0 : index
    %c0_34 = arith.constant 0 : index
    %c17 = arith.constant 17 : index
    %40 = vector.load %arg3[%c0_33, %c0_34, %c17] : memref<1x8x320xbf16, #tpu.memory_space<vmem>>, vector<1x8x256xbf16>
    %41 = vector.shape_cast %40 : vector<1x8x256xbf16> to vector<8x256xbf16>
    %c2 = arith.constant 2 : index
    %c0_35 = arith.constant 0 : index
    %c0_36 = arith.constant 0 : index
    %42 = vector.load %arg4[%c2, %c0_35, %c0_36] : memref<9x8x8xbf16, #tpu.memory_space<vmem>>, vector<1x8x8xbf16>
    %43 = vector.shape_cast %42 : vector<1x8x8xbf16> to vector<8x8xbf16>
    %cst_37 = arith.constant dense<0.000000e+00> : vector<8x256xf32>
    %44 = tpu.matmul %43, %41, %cst_37 {dimension_numbers = #tpu.dot_dimension_numbers<[1], [0], [0], [1], [0, 0, 1, 1], [], []>} : vector<8x8xbf16>, vector<8x256xbf16>, vector<8x256xf32> -> vector<8x256xf32>
    %c0_38 = arith.constant 0 : index
    %c0_39 = arith.constant 0 : index
    %c33 = arith.constant 33 : index
    %45 = vector.load %arg3[%c0_38, %c0_39, %c33] : memref<1x8x320xbf16, #tpu.memory_space<vmem>>, vector<1x8x256xbf16>
    %46 = vector.shape_cast %45 : vector<1x8x256xbf16> to vector<8x256xbf16>
    %c5 = arith.constant 5 : index
    %c0_40 = arith.constant 0 : index
    %c0_41 = arith.constant 0 : index
    %47 = vector.load %arg4[%c5, %c0_40, %c0_41] : memref<9x8x8xbf16, #tpu.memory_space<vmem>>, vector<1x8x8xbf16>
    %48 = vector.shape_cast %47 : vector<1x8x8xbf16> to vector<8x8xbf16>
    %cst_42 = arith.constant dense<0.000000e+00> : vector<8x256xf32>
    %49 = tpu.matmul %48, %46, %cst_42 {dimension_numbers = #tpu.dot_dimension_numbers<[1], [0], [0], [1], [0, 0, 1, 1], [], []>} : vector<8x8xbf16>, vector<8x256xbf16>, vector<8x256xf32> -> vector<8x256xf32>
    %50 = arith.addf %44, %49 : vector<8x256xf32>
    %c0_43 = arith.constant 0 : index
    %c0_44 = arith.constant 0 : index
    %c49 = arith.constant 49 : index
    %51 = vector.load %arg3[%c0_43, %c0_44, %c49] : memref<1x8x320xbf16, #tpu.memory_space<vmem>>, vector<1x8x256xbf16>
    %52 = vector.shape_cast %51 : vector<1x8x256xbf16> to vector<8x256xbf16>
    %c8 = arith.constant 8 : index
    %c0_45 = arith.constant 0 : index
    %c0_46 = arith.constant 0 : index
    %53 = vector.load %arg4[%c8, %c0_45, %c0_46] : memref<9x8x8xbf16, #tpu.memory_space<vmem>>, vector<1x8x8xbf16>
    %54 = vector.shape_cast %53 : vector<1x8x8xbf16> to vector<8x8xbf16>
    %cst_47 = arith.constant dense<0.000000e+00> : vector<8x256xf32>
    %55 = tpu.matmul %54, %52, %cst_47 {dimension_numbers = #tpu.dot_dimension_numbers<[1], [0], [0], [1], [0, 0, 1, 1], [], []>} : vector<8x8xbf16>, vector<8x256xbf16>, vector<8x256xf32> -> vector<8x256xf32>
    %56 = arith.addf %50, %55 : vector<8x256xf32>
    %c1_48 = arith.constant 1 : index
    %c0_49 = arith.constant 0 : index
    %57 = vector.load %arg6[%c1_48, %c0_49] : memref<2x256xf32, #tpu.memory_space<vmem>>, vector<1x256xf32>
    %58 = vector.broadcast %57 : vector<1x256xf32> to vector<8x256xf32>
    %59 = arith.mulf %56, %58 : vector<8x256xf32>
    %60 = arith.addf %39, %59 : vector<8x256xf32>
    %c0_i32 = arith.constant 0 : i32
    %61 = arith.cmpi eq, %arg1, %c0_i32 : i32
    %62 = arith.extui %61 : i1 to i32
    %c0_i32_50 = arith.constant 0 : i32
    %63 = arith.cmpi ne, %62, %c0_i32_50 : i32
    scf.if %63 {
      %c0_i32_52 = arith.constant 0 : i32
      %67 = arith.cmpi eq, %arg2, %c0_i32_52 : i32
      %68 = arith.extui %67 : i1 to i32
      %c0_i32_53 = arith.constant 0 : i32
      %69 = arith.cmpi ne, %68, %c0_i32_53 : i32
      scf.if %69 {
        %cst_64 = arith.constant 0.000000e+00 : f32
        %81 = vector.broadcast %cst_64 : f32 to vector<8x1xf32>
        %c0_65 = arith.constant 0 : index
        %c0_66 = arith.constant 0 : index
        %82 = vector.load %arg10[%c0_65, %c0_66] : memref<8x1xf32, #tpu.memory_space<vmem>>, vector<8x1xf32>
        tpu.vector_store %arg10[%c0_65, %c0_66], %81 {strides = array<i32>} : memref<8x1xf32, #tpu.memory_space<vmem>>, vector<8x1xf32>,
        %cst_67 = arith.constant 0.000000e+00 : f32
        %83 = vector.broadcast %cst_67 : f32 to vector<8x1xf32>
        %c0_68 = arith.constant 0 : index
        %c0_69 = arith.constant 0 : index
        %84 = vector.load %arg11[%c0_68, %c0_69] : memref<8x1xf32, #tpu.memory_space<vmem>>, vector<8x1xf32>
        tpu.vector_store %arg11[%c0_68, %c0_69], %83 {strides = array<i32>} : memref<8x1xf32, #tpu.memory_space<vmem>>, vector<8x1xf32>,
      } else {
      }
      %c0_54 = arith.constant 0 : index
      %c0_55 = arith.constant 0 : index
      %70 = vector.load %arg10[%c0_54, %c0_55] : memref<8x1xf32, #tpu.memory_space<vmem>>, vector<8x1xf32>
      %cst_56 = arith.constant dense<0.000000e+00> : vector<8xf32>
      %71 = vector.multi_reduction <add>, %60, %cst_56 [1] : vector<8x256xf32> to vector<8xf32>
      %72 = vector.shape_cast %71 : vector<8xf32> to vector<8x1xf32>
      %73 = arith.addf %70, %72 : vector<8x1xf32>
      %c0_57 = arith.constant 0 : index
      %c0_58 = arith.constant 0 : index
      %74 = vector.load %arg10[%c0_57, %c0_58] : memref<8x1xf32, #tpu.memory_space<vmem>>, vector<8x1xf32>
      tpu.vector_store %arg10[%c0_57, %c0_58], %73 {strides = array<i32>} : memref<8x1xf32, #tpu.memory_space<vmem>>, vector<8x1xf32>,
      %c0_59 = arith.constant 0 : index
      %c0_60 = arith.constant 0 : index
      %75 = vector.load %arg11[%c0_59, %c0_60] : memref<8x1xf32, #tpu.memory_space<vmem>>, vector<8x1xf32>
      %76 = arith.mulf %60, %60 : vector<8x256xf32>
      %cst_61 = arith.constant dense<0.000000e+00> : vector<8xf32>
      %77 = vector.multi_reduction <add>, %76, %cst_61 [1] : vector<8x256xf32> to vector<8xf32>
      %78 = vector.shape_cast %77 : vector<8xf32> to vector<8x1xf32>
      %79 = arith.addf %75, %78 : vector<8x1xf32>
      %c0_62 = arith.constant 0 : index
      %c0_63 = arith.constant 0 : index
      %80 = vector.load %arg11[%c0_62, %c0_63] : memref<8x1xf32, #tpu.memory_space<vmem>>, vector<8x1xf32>
      tpu.vector_store %arg11[%c0_62, %c0_63], %79 {strides = array<i32>} : memref<8x1xf32, #tpu.memory_space<vmem>>, vector<8x1xf32>,
    } else {
    }
    %c1_i32 = arith.constant 1 : i32
    %64 = arith.cmpi eq, %arg1, %c1_i32 : i32
    %65 = arith.extui %64 : i1 to i32
    %c0_i32_51 = arith.constant 0 : i32
    %66 = arith.cmpi ne, %65, %c0_i32_51 : i32
    scf.if %66 {
      %c0_i32_52 = arith.constant 0 : i32
      %67 = arith.cmpi eq, %arg2, %c0_i32_52 : i32
      %68 = arith.extui %67 : i1 to i32
      %c0_i32_53 = arith.constant 0 : i32
      %69 = arith.cmpi ne, %68, %c0_i32_53 : i32
      scf.if %69 {
        %c0_63 = arith.constant 0 : index
        %c0_64 = arith.constant 0 : index
        %84 = vector.load %arg10[%c0_63, %c0_64] : memref<8x1xf32, #tpu.memory_space<vmem>>, vector<8x1xf32>
        %cst_65 = arith.constant 0.001953125 : f32
        %85 = vector.broadcast %cst_65 : f32 to vector<8x1xf32>
        %86 = arith.mulf %84, %85 : vector<8x1xf32>
        %c0_66 = arith.constant 0 : index
        %c0_67 = arith.constant 0 : index
        %87 = vector.load %arg11[%c0_66, %c0_67] : memref<8x1xf32, #tpu.memory_space<vmem>>, vector<8x1xf32>
        %cst_68 = arith.constant 0.001953125 : f32
        %88 = vector.broadcast %cst_68 : f32 to vector<8x1xf32>
        %89 = arith.mulf %87, %88 : vector<8x1xf32>
        %90 = arith.mulf %86, %86 : vector<8x1xf32>
        %91 = arith.subf %89, %90 : vector<8x1xf32>
        %cst_69 = arith.constant 0.000000e+00 : f32
        %92 = vector.broadcast %cst_69 : f32 to vector<8x1xf32>
        %93 = arith.maximumf %91, %92 : vector<8x1xf32>
        %cst_70 = arith.constant 9.99999974E-6 : f32
        %94 = vector.broadcast %cst_70 : f32 to vector<8x1xf32>
        %95 = arith.addf %93, %94 : vector<8x1xf32>
        %96 = math.rsqrt %95 : vector<8x1xf32>
        %c0_71 = arith.constant 0 : index
        %c0_72 = arith.constant 0 : index
        %97 = vector.load %arg7[%c0_71, %c0_72] : memref<8x1xf32, #tpu.memory_space<vmem>>, vector<8x1xf32>
        %98 = arith.mulf %97, %96 : vector<8x1xf32>
        %c0_73 = arith.constant 0 : index
        %c0_74 = arith.constant 0 : index
        %99 = vector.load %arg12[%c0_73, %c0_74] : memref<8x1xf32, #tpu.memory_space<vmem>>, vector<8x1xf32>
        tpu.vector_store %arg12[%c0_73, %c0_74], %98 {strides = array<i32>} : memref<8x1xf32, #tpu.memory_space<vmem>>, vector<8x1xf32>,
        %c0_75 = arith.constant 0 : index
        %c0_76 = arith.constant 0 : index
        %100 = vector.load %arg8[%c0_75, %c0_76] : memref<8x1xf32, #tpu.memory_space<vmem>>, vector<8x1xf32>
        %c0_77 = arith.constant 0 : index
        %c0_78 = arith.constant 0 : index
        %101 = vector.load %arg7[%c0_77, %c0_78] : memref<8x1xf32, #tpu.memory_space<vmem>>, vector<8x1xf32>
        %102 = arith.mulf %86, %101 : vector<8x1xf32>
        %103 = arith.mulf %102, %96 : vector<8x1xf32>
        %104 = arith.subf %100, %103 : vector<8x1xf32>
        %c0_79 = arith.constant 0 : index
        %c0_80 = arith.constant 0 : index
        %105 = vector.load %arg13[%c0_79, %c0_80] : memref<8x1xf32, #tpu.memory_space<vmem>>, vector<8x1xf32>
        tpu.vector_store %arg13[%c0_79, %c0_80], %104 {strides = array<i32>} : memref<8x1xf32, #tpu.memory_space<vmem>>, vector<8x1xf32>,
      } else {
      }
      %c0_54 = arith.constant 0 : index
      %c0_55 = arith.constant 0 : index
      %70 = vector.load %arg12[%c0_54, %c0_55] : memref<8x1xf32, #tpu.memory_space<vmem>>, vector<8x1xf32>
      %71 = vector.broadcast %70 : vector<8x1xf32> to vector<8x256xf32>
      %72 = arith.mulf %60, %71 : vector<8x256xf32>
      %c0_56 = arith.constant 0 : index
      %c0_57 = arith.constant 0 : index
      %73 = vector.load %arg13[%c0_56, %c0_57] : memref<8x1xf32, #tpu.memory_space<vmem>>, vector<8x1xf32>
      %74 = vector.broadcast %73 : vector<8x1xf32> to vector<8x256xf32>
      %75 = arith.addf %72, %74 : vector<8x256xf32>
      %cst_58 = arith.constant 0.000000e+00 : f32
      %76 = vector.broadcast %cst_58 : f32 to vector<8x256xf32>
      %77 = arith.maximumf %75, %76 : vector<8x256xf32>
      %78 = arith.truncf %77 : vector<8x256xf32> to vector<8x256xbf16>
      %cst_59 = arith.constant 0.000000e+00 : bf16
      %79 = vector.broadcast %cst_59 : bf16 to vector<8x32xbf16>
      %80 = tpu.concatenate %79, %78, %79 in 1 : vector<8x32xbf16>, vector<8x256xbf16>, vector<8x32xbf16> -> vector<8x320xbf16>
      %c0_60 = arith.constant 0 : index
      %c0_61 = arith.constant 0 : index
      %c0_62 = arith.constant 0 : index
      %81 = vector.load %arg9[%c0_60, %c0_61, %c0_62] : memref<1x8x320xbf16, #tpu.memory_space<vmem>>, vector<1x8x320xbf16>
      %82 = vector.shape_cast %81 : vector<1x8x320xbf16> to vector<8x320xbf16>
      %83 = vector.shape_cast %80 : vector<8x320xbf16> to vector<1x8x320xbf16>
      tpu.vector_store %arg9[%c0_60, %c0_61, %c0_62], %83 {strides = array<i32>} : memref<1x8x320xbf16, #tpu.memory_space<vmem>>, vector<1x8x320xbf16>,
    } else {
    }
    return
  }
  func.func @transform_0(%arg0: i32, %arg1: i32, %arg2: i32) -> (i32, i32, i32) {
    %c0_i32 = arith.constant 0 : i32
    %c0_i32_0 = arith.constant 0 : i32
    %c0_i32_1 = arith.constant 0 : i32
    return %arg2, %c0_i32, %c0_i32_0 : i32, i32, i32
  }
  func.func @transform_1(%arg0: i32, %arg1: i32, %arg2: i32) -> (i32, i32, i32) {
    %c0_i32 = arith.constant 0 : i32
    %c0_i32_0 = arith.constant 0 : i32
    %c0_i32_1 = arith.constant 0 : i32
    return %c0_i32, %arg0, %c0_i32_0 : i32, i32, i32
  }
  func.func @transform_2(%arg0: i32, %arg1: i32, %arg2: i32) -> (i32, i32) {
    %c0_i32 = arith.constant 0 : i32
    %c0_i32_0 = arith.constant 0 : i32
    return %arg0, %c0_i32 : i32, i32
  }
  func.func @transform_3(%arg0: i32, %arg1: i32, %arg2: i32) -> (i32, i32) {
    %c0_i32 = arith.constant 0 : i32
    %c0_i32_0 = arith.constant 0 : i32
    %c0_i32_1 = arith.constant 0 : i32
    return %c0_i32, %c0_i32_0 : i32, i32
  }
  func.func @transform_4(%arg0: i32, %arg1: i32, %arg2: i32) -> (i32, i32) {
    %c0_i32 = arith.constant 0 : i32
    %c0_i32_0 = arith.constant 0 : i32
    return %arg0, %c0_i32 : i32, i32
  }
  func.func @transform_5(%arg0: i32, %arg1: i32, %arg2: i32) -> (i32, i32) {
    %c0_i32 = arith.constant 0 : i32
    %c0_i32_0 = arith.constant 0 : i32
    return %arg0, %c0_i32 : i32, i32
  }
  func.func @transform_6(%arg0: i32, %arg1: i32, %arg2: i32) -> (i32, i32, i32) {
    %0 = arith.muli %arg2, %arg1 : i32
    %c0_i32 = arith.constant 0 : i32
    %c0_i32_0 = arith.constant 0 : i32
    return %0, %arg0, %c0_i32 : i32, i32, i32
  }
}

module attributes {stable_mosaic.version = 11 : i64} {
  func.func @_coordconv_bn_relu_kernel(%arg0: i32, %arg1: i32, %arg2: i32, %arg3: memref<1x4x320xbf16, #tpu.memory_space<vmem>>, %arg4: memref<9x8x4xbf16, #tpu.memory_space<vmem>>, %arg5: memref<8x256xf32, #tpu.memory_space<vmem>>, %arg6: memref<2x256xf32, #tpu.memory_space<vmem>>, %arg7: memref<8x1xf32, #tpu.memory_space<vmem>>, %arg8: memref<8x1xf32, #tpu.memory_space<vmem>>, %arg9: memref<1x8x320xbf16, #tpu.memory_space<vmem>>, %arg10: memref<8x1xf32, #tpu.memory_space<vmem>>, %arg11: memref<8x1xf32, #tpu.memory_space<vmem>>, %arg12: memref<8x1xf32, #tpu.memory_space<vmem>>, %arg13: memref<8x1xf32, #tpu.memory_space<vmem>>) attributes {dimension_semantics = [#tpu.dimension_semantics<parallel>, #tpu.dimension_semantics<arbitrary>, #tpu.dimension_semantics<arbitrary>], iteration_bounds = array<i64: 1, 2, 2>, scalar_prefetch = 0 : i64, scratch_operands = 4 : i64, tpu.core_type = #tpu.core_type<tc>, window_params = [{transform_indices = @transform_0, window_bounds = array<i64: 1, 4, 320>}, {transform_indices = @transform_1, window_bounds = array<i64: 9, 8, 4>}, {transform_indices = @transform_2, window_bounds = array<i64: 8, 256>}, {pipeline_mode = #tpu.pipeline_mode<synchronous>, transform_indices = @transform_3, window_bounds = array<i64: 2, 256>}, {transform_indices = @transform_4, window_bounds = array<i64: 8, 1>}, {transform_indices = @transform_5, window_bounds = array<i64: 8, 1>}, {transform_indices = @transform_6, window_bounds = array<i64: 1, 8, 320>}]} {
    %c0 = arith.constant 0 : index
    %c0_0 = arith.constant 0 : index
    %0 = vector.load %arg5[%c0, %c0_0] : memref<8x256xf32, #tpu.memory_space<vmem>>, vector<8x256xf32>
    %c0_1 = arith.constant 0 : index
    %c0_2 = arith.constant 0 : index
    %c15 = arith.constant 15 : index
    %1 = vector.load %arg3[%c0_1, %c0_2, %c15] : memref<1x4x320xbf16, #tpu.memory_space<vmem>>, vector<1x4x256xbf16>
    %2 = vector.shape_cast %1 : vector<1x4x256xbf16> to vector<4x256xbf16>
    %c0_3 = arith.constant 0 : index
    %c0_4 = arith.constant 0 : index
    %c0_5 = arith.constant 0 : index
    %3 = vector.load %arg4[%c0_3, %c0_4, %c0_5] : memref<9x8x4xbf16, #tpu.memory_space<vmem>>, vector<1x8x4xbf16>
    %4 = vector.shape_cast %3 : vector<1x8x4xbf16> to vector<8x4xbf16>
    %cst = arith.constant dense<0.000000e+00> : vector<8x256xf32>
    %5 = tpu.matmul %4, %2, %cst {dimension_numbers = #tpu.dot_dimension_numbers<[1], [0], [0], [1], [0, 0, 1, 1], [], []>} : vector<8x4xbf16>, vector<4x256xbf16>, vector<8x256xf32> -> vector<8x256xf32>
    %c0_6 = arith.constant 0 : index
    %c0_7 = arith.constant 0 : index
    %c31 = arith.constant 31 : index
    %6 = vector.load %arg3[%c0_6, %c0_7, %c31] : memref<1x4x320xbf16, #tpu.memory_space<vmem>>, vector<1x4x256xbf16>
    %7 = vector.shape_cast %6 : vector<1x4x256xbf16> to vector<4x256xbf16>
    %c3 = arith.constant 3 : index
    %c0_8 = arith.constant 0 : index
    %c0_9 = arith.constant 0 : index
    %8 = vector.load %arg4[%c3, %c0_8, %c0_9] : memref<9x8x4xbf16, #tpu.memory_space<vmem>>, vector<1x8x4xbf16>
    %9 = vector.shape_cast %8 : vector<1x8x4xbf16> to vector<8x4xbf16>
    %cst_10 = arith.constant dense<0.000000e+00> : vector<8x256xf32>
    %10 = tpu.matmul %9, %7, %cst_10 {dimension_numbers = #tpu.dot_dimension_numbers<[1], [0], [0], [1], [0, 0, 1, 1], [], []>} : vector<8x4xbf16>, vector<4x256xbf16>, vector<8x256xf32> -> vector<8x256xf32>
    %11 = arith.addf %5, %10 : vector<8x256xf32>
    %c0_11 = arith.constant 0 : index
    %c0_12 = arith.constant 0 : index
    %c47 = arith.constant 47 : index
    %12 = vector.load %arg3[%c0_11, %c0_12, %c47] : memref<1x4x320xbf16, #tpu.memory_space<vmem>>, vector<1x4x256xbf16>
    %13 = vector.shape_cast %12 : vector<1x4x256xbf16> to vector<4x256xbf16>
    %c6 = arith.constant 6 : index
    %c0_13 = arith.constant 0 : index
    %c0_14 = arith.constant 0 : index
    %14 = vector.load %arg4[%c6, %c0_13, %c0_14] : memref<9x8x4xbf16, #tpu.memory_space<vmem>>, vector<1x8x4xbf16>
    %15 = vector.shape_cast %14 : vector<1x8x4xbf16> to vector<8x4xbf16>
    %cst_15 = arith.constant dense<0.000000e+00> : vector<8x256xf32>
    %16 = tpu.matmul %15, %13, %cst_15 {dimension_numbers = #tpu.dot_dimension_numbers<[1], [0], [0], [1], [0, 0, 1, 1], [], []>} : vector<8x4xbf16>, vector<4x256xbf16>, vector<8x256xf32> -> vector<8x256xf32>
    %17 = arith.addf %11, %16 : vector<8x256xf32>
    %c0_16 = arith.constant 0 : index
    %c0_17 = arith.constant 0 : index
    %18 = vector.load %arg6[%c0_16, %c0_17] : memref<2x256xf32, #tpu.memory_space<vmem>>, vector<1x256xf32>
    %19 = vector.broadcast %18 : vector<1x256xf32> to vector<8x256xf32>
    %20 = arith.mulf %17, %19 : vector<8x256xf32>
    %21 = arith.addf %0, %20 : vector<8x256xf32>
    %c0_18 = arith.constant 0 : index
    %c0_19 = arith.constant 0 : index
    %c16 = arith.constant 16 : index
    %22 = vector.load %arg3[%c0_18, %c0_19, %c16] : memref<1x4x320xbf16, #tpu.memory_space<vmem>>, vector<1x4x256xbf16>
    %23 = vector.shape_cast %22 : vector<1x4x256xbf16> to vector<4x256xbf16>
    %c1 = arith.constant 1 : index
    %c0_20 = arith.constant 0 : index
    %c0_21 = arith.constant 0 : index
    %24 = vector.load %arg4[%c1, %c0_20, %c0_21] : memref<9x8x4xbf16, #tpu.memory_space<vmem>>, vector<1x8x4xbf16>
    %25 = vector.shape_cast %24 : vector<1x8x4xbf16> to vector<8x4xbf16>
    %cst_22 = arith.constant dense<0.000000e+00> : vector<8x256xf32>
    %26 = tpu.matmul %25, %23, %cst_22 {dimension_numbers = #tpu.dot_dimension_numbers<[1], [0], [0], [1], [0, 0, 1, 1], [], []>} : vector<8x4xbf16>, vector<4x256xbf16>, vector<8x256xf32> -> vector<8x256xf32>
    %c0_23 = arith.constant 0 : index
    %c0_24 = arith.constant 0 : index
    %c32 = arith.constant 32 : index
    %27 = vector.load %arg3[%c0_23, %c0_24, %c32] : memref<1x4x320xbf16, #tpu.memory_space<vmem>>, vector<1x4x256xbf16>
    %28 = vector.shape_cast %27 : vector<1x4x256xbf16> to vector<4x256xbf16>
    %c4 = arith.constant 4 : index
    %c0_25 = arith.constant 0 : index
    %c0_26 = arith.constant 0 : index
    %29 = vector.load %arg4[%c4, %c0_25, %c0_26] : memref<9x8x4xbf16, #tpu.memory_space<vmem>>, vector<1x8x4xbf16>
    %30 = vector.shape_cast %29 : vector<1x8x4xbf16> to vector<8x4xbf16>
    %cst_27 = arith.constant dense<0.000000e+00> : vector<8x256xf32>
    %31 = tpu.matmul %30, %28, %cst_27 {dimension_numbers = #tpu.dot_dimension_numbers<[1], [0], [0], [1], [0, 0, 1, 1], [], []>} : vector<8x4xbf16>, vector<4x256xbf16>, vector<8x256xf32> -> vector<8x256xf32>
    %32 = arith.addf %26, %31 : vector<8x256xf32>
    %c0_28 = arith.constant 0 : index
    %c0_29 = arith.constant 0 : index
    %c48 = arith.constant 48 : index
    %33 = vector.load %arg3[%c0_28, %c0_29, %c48] : memref<1x4x320xbf16, #tpu.memory_space<vmem>>, vector<1x4x256xbf16>
    %34 = vector.shape_cast %33 : vector<1x4x256xbf16> to vector<4x256xbf16>
    %c7 = arith.constant 7 : index
    %c0_30 = arith.constant 0 : index
    %c0_31 = arith.constant 0 : index
    %35 = vector.load %arg4[%c7, %c0_30, %c0_31] : memref<9x8x4xbf16, #tpu.memory_space<vmem>>, vector<1x8x4xbf16>
    %36 = vector.shape_cast %35 : vector<1x8x4xbf16> to vector<8x4xbf16>
    %cst_32 = arith.constant dense<0.000000e+00> : vector<8x256xf32>
    %37 = tpu.matmul %36, %34, %cst_32 {dimension_numbers = #tpu.dot_dimension_numbers<[1], [0], [0], [1], [0, 0, 1, 1], [], []>} : vector<8x4xbf16>, vector<4x256xbf16>, vector<8x256xf32> -> vector<8x256xf32>
    %38 = arith.addf %32, %37 : vector<8x256xf32>
    %39 = arith.addf %21, %38 : vector<8x256xf32>
    %c0_33 = arith.constant 0 : index
    %c0_34 = arith.constant 0 : index
    %c17 = arith.constant 17 : index
    %40 = vector.load %arg3[%c0_33, %c0_34, %c17] : memref<1x4x320xbf16, #tpu.memory_space<vmem>>, vector<1x4x256xbf16>
    %41 = vector.shape_cast %40 : vector<1x4x256xbf16> to vector<4x256xbf16>
    %c2 = arith.constant 2 : index
    %c0_35 = arith.constant 0 : index
    %c0_36 = arith.constant 0 : index
    %42 = vector.load %arg4[%c2, %c0_35, %c0_36] : memref<9x8x4xbf16, #tpu.memory_space<vmem>>, vector<1x8x4xbf16>
    %43 = vector.shape_cast %42 : vector<1x8x4xbf16> to vector<8x4xbf16>
    %cst_37 = arith.constant dense<0.000000e+00> : vector<8x256xf32>
    %44 = tpu.matmul %43, %41, %cst_37 {dimension_numbers = #tpu.dot_dimension_numbers<[1], [0], [0], [1], [0, 0, 1, 1], [], []>} : vector<8x4xbf16>, vector<4x256xbf16>, vector<8x256xf32> -> vector<8x256xf32>
    %c0_38 = arith.constant 0 : index
    %c0_39 = arith.constant 0 : index
    %c33 = arith.constant 33 : index
    %45 = vector.load %arg3[%c0_38, %c0_39, %c33] : memref<1x4x320xbf16, #tpu.memory_space<vmem>>, vector<1x4x256xbf16>
    %46 = vector.shape_cast %45 : vector<1x4x256xbf16> to vector<4x256xbf16>
    %c5 = arith.constant 5 : index
    %c0_40 = arith.constant 0 : index
    %c0_41 = arith.constant 0 : index
    %47 = vector.load %arg4[%c5, %c0_40, %c0_41] : memref<9x8x4xbf16, #tpu.memory_space<vmem>>, vector<1x8x4xbf16>
    %48 = vector.shape_cast %47 : vector<1x8x4xbf16> to vector<8x4xbf16>
    %cst_42 = arith.constant dense<0.000000e+00> : vector<8x256xf32>
    %49 = tpu.matmul %48, %46, %cst_42 {dimension_numbers = #tpu.dot_dimension_numbers<[1], [0], [0], [1], [0, 0, 1, 1], [], []>} : vector<8x4xbf16>, vector<4x256xbf16>, vector<8x256xf32> -> vector<8x256xf32>
    %50 = arith.addf %44, %49 : vector<8x256xf32>
    %c0_43 = arith.constant 0 : index
    %c0_44 = arith.constant 0 : index
    %c49 = arith.constant 49 : index
    %51 = vector.load %arg3[%c0_43, %c0_44, %c49] : memref<1x4x320xbf16, #tpu.memory_space<vmem>>, vector<1x4x256xbf16>
    %52 = vector.shape_cast %51 : vector<1x4x256xbf16> to vector<4x256xbf16>
    %c8 = arith.constant 8 : index
    %c0_45 = arith.constant 0 : index
    %c0_46 = arith.constant 0 : index
    %53 = vector.load %arg4[%c8, %c0_45, %c0_46] : memref<9x8x4xbf16, #tpu.memory_space<vmem>>, vector<1x8x4xbf16>
    %54 = vector.shape_cast %53 : vector<1x8x4xbf16> to vector<8x4xbf16>
    %cst_47 = arith.constant dense<0.000000e+00> : vector<8x256xf32>
    %55 = tpu.matmul %54, %52, %cst_47 {dimension_numbers = #tpu.dot_dimension_numbers<[1], [0], [0], [1], [0, 0, 1, 1], [], []>} : vector<8x4xbf16>, vector<4x256xbf16>, vector<8x256xf32> -> vector<8x256xf32>
    %56 = arith.addf %50, %55 : vector<8x256xf32>
    %c1_48 = arith.constant 1 : index
    %c0_49 = arith.constant 0 : index
    %57 = vector.load %arg6[%c1_48, %c0_49] : memref<2x256xf32, #tpu.memory_space<vmem>>, vector<1x256xf32>
    %58 = vector.broadcast %57 : vector<1x256xf32> to vector<8x256xf32>
    %59 = arith.mulf %56, %58 : vector<8x256xf32>
    %60 = arith.addf %39, %59 : vector<8x256xf32>
    %c0_i32 = arith.constant 0 : i32
    %61 = arith.cmpi eq, %arg1, %c0_i32 : i32
    %62 = arith.extui %61 : i1 to i32
    %c0_i32_50 = arith.constant 0 : i32
    %63 = arith.cmpi ne, %62, %c0_i32_50 : i32
    scf.if %63 {
      %c0_i32_52 = arith.constant 0 : i32
      %67 = arith.cmpi eq, %arg2, %c0_i32_52 : i32
      %68 = arith.extui %67 : i1 to i32
      %c0_i32_53 = arith.constant 0 : i32
      %69 = arith.cmpi ne, %68, %c0_i32_53 : i32
      scf.if %69 {
        %cst_64 = arith.constant 0.000000e+00 : f32
        %81 = vector.broadcast %cst_64 : f32 to vector<8x1xf32>
        %c0_65 = arith.constant 0 : index
        %c0_66 = arith.constant 0 : index
        %82 = vector.load %arg10[%c0_65, %c0_66] : memref<8x1xf32, #tpu.memory_space<vmem>>, vector<8x1xf32>
        tpu.vector_store %arg10[%c0_65, %c0_66], %81 {strides = array<i32>} : memref<8x1xf32, #tpu.memory_space<vmem>>, vector<8x1xf32>,
        %cst_67 = arith.constant 0.000000e+00 : f32
        %83 = vector.broadcast %cst_67 : f32 to vector<8x1xf32>
        %c0_68 = arith.constant 0 : index
        %c0_69 = arith.constant 0 : index
        %84 = vector.load %arg11[%c0_68, %c0_69] : memref<8x1xf32, #tpu.memory_space<vmem>>, vector<8x1xf32>
        tpu.vector_store %arg11[%c0_68, %c0_69], %83 {strides = array<i32>} : memref<8x1xf32, #tpu.memory_space<vmem>>, vector<8x1xf32>,
      } else {
      }
      %c0_54 = arith.constant 0 : index
      %c0_55 = arith.constant 0 : index
      %70 = vector.load %arg10[%c0_54, %c0_55] : memref<8x1xf32, #tpu.memory_space<vmem>>, vector<8x1xf32>
      %cst_56 = arith.constant dense<0.000000e+00> : vector<8xf32>
      %71 = vector.multi_reduction <add>, %60, %cst_56 [1] : vector<8x256xf32> to vector<8xf32>
      %72 = vector.shape_cast %71 : vector<8xf32> to vector<8x1xf32>
      %73 = arith.addf %70, %72 : vector<8x1xf32>
      %c0_57 = arith.constant 0 : index
      %c0_58 = arith.constant 0 : index
      %74 = vector.load %arg10[%c0_57, %c0_58] : memref<8x1xf32, #tpu.memory_space<vmem>>, vector<8x1xf32>
      tpu.vector_store %arg10[%c0_57, %c0_58], %73 {strides = array<i32>} : memref<8x1xf32, #tpu.memory_space<vmem>>, vector<8x1xf32>,
      %c0_59 = arith.constant 0 : index
      %c0_60 = arith.constant 0 : index
      %75 = vector.load %arg11[%c0_59, %c0_60] : memref<8x1xf32, #tpu.memory_space<vmem>>, vector<8x1xf32>
      %76 = arith.mulf %60, %60 : vector<8x256xf32>
      %cst_61 = arith.constant dense<0.000000e+00> : vector<8xf32>
      %77 = vector.multi_reduction <add>, %76, %cst_61 [1] : vector<8x256xf32> to vector<8xf32>
      %78 = vector.shape_cast %77 : vector<8xf32> to vector<8x1xf32>
      %79 = arith.addf %75, %78 : vector<8x1xf32>
      %c0_62 = arith.constant 0 : index
      %c0_63 = arith.constant 0 : index
      %80 = vector.load %arg11[%c0_62, %c0_63] : memref<8x1xf32, #tpu.memory_space<vmem>>, vector<8x1xf32>
      tpu.vector_store %arg11[%c0_62, %c0_63], %79 {strides = array<i32>} : memref<8x1xf32, #tpu.memory_space<vmem>>, vector<8x1xf32>,
    } else {
    }
    %c1_i32 = arith.constant 1 : i32
    %64 = arith.cmpi eq, %arg1, %c1_i32 : i32
    %65 = arith.extui %64 : i1 to i32
    %c0_i32_51 = arith.constant 0 : i32
    %66 = arith.cmpi ne, %65, %c0_i32_51 : i32
    scf.if %66 {
      %c0_i32_52 = arith.constant 0 : i32
      %67 = arith.cmpi eq, %arg2, %c0_i32_52 : i32
      %68 = arith.extui %67 : i1 to i32
      %c0_i32_53 = arith.constant 0 : i32
      %69 = arith.cmpi ne, %68, %c0_i32_53 : i32
      scf.if %69 {
        %c0_63 = arith.constant 0 : index
        %c0_64 = arith.constant 0 : index
        %84 = vector.load %arg10[%c0_63, %c0_64] : memref<8x1xf32, #tpu.memory_space<vmem>>, vector<8x1xf32>
        %cst_65 = arith.constant 0.001953125 : f32
        %85 = vector.broadcast %cst_65 : f32 to vector<8x1xf32>
        %86 = arith.mulf %84, %85 : vector<8x1xf32>
        %c0_66 = arith.constant 0 : index
        %c0_67 = arith.constant 0 : index
        %87 = vector.load %arg11[%c0_66, %c0_67] : memref<8x1xf32, #tpu.memory_space<vmem>>, vector<8x1xf32>
        %cst_68 = arith.constant 0.001953125 : f32
        %88 = vector.broadcast %cst_68 : f32 to vector<8x1xf32>
        %89 = arith.mulf %87, %88 : vector<8x1xf32>
        %90 = arith.mulf %86, %86 : vector<8x1xf32>
        %91 = arith.subf %89, %90 : vector<8x1xf32>
        %cst_69 = arith.constant 0.000000e+00 : f32
        %92 = vector.broadcast %cst_69 : f32 to vector<8x1xf32>
        %93 = arith.maximumf %91, %92 : vector<8x1xf32>
        %cst_70 = arith.constant 9.99999974E-6 : f32
        %94 = vector.broadcast %cst_70 : f32 to vector<8x1xf32>
        %95 = arith.addf %93, %94 : vector<8x1xf32>
        %96 = math.rsqrt %95 : vector<8x1xf32>
        %c0_71 = arith.constant 0 : index
        %c0_72 = arith.constant 0 : index
        %97 = vector.load %arg7[%c0_71, %c0_72] : memref<8x1xf32, #tpu.memory_space<vmem>>, vector<8x1xf32>
        %98 = arith.mulf %97, %96 : vector<8x1xf32>
        %c0_73 = arith.constant 0 : index
        %c0_74 = arith.constant 0 : index
        %99 = vector.load %arg12[%c0_73, %c0_74] : memref<8x1xf32, #tpu.memory_space<vmem>>, vector<8x1xf32>
        tpu.vector_store %arg12[%c0_73, %c0_74], %98 {strides = array<i32>} : memref<8x1xf32, #tpu.memory_space<vmem>>, vector<8x1xf32>,
        %c0_75 = arith.constant 0 : index
        %c0_76 = arith.constant 0 : index
        %100 = vector.load %arg8[%c0_75, %c0_76] : memref<8x1xf32, #tpu.memory_space<vmem>>, vector<8x1xf32>
        %c0_77 = arith.constant 0 : index
        %c0_78 = arith.constant 0 : index
        %101 = vector.load %arg7[%c0_77, %c0_78] : memref<8x1xf32, #tpu.memory_space<vmem>>, vector<8x1xf32>
        %102 = arith.mulf %86, %101 : vector<8x1xf32>
        %103 = arith.mulf %102, %96 : vector<8x1xf32>
        %104 = arith.subf %100, %103 : vector<8x1xf32>
        %c0_79 = arith.constant 0 : index
        %c0_80 = arith.constant 0 : index
        %105 = vector.load %arg13[%c0_79, %c0_80] : memref<8x1xf32, #tpu.memory_space<vmem>>, vector<8x1xf32>
        tpu.vector_store %arg13[%c0_79, %c0_80], %104 {strides = array<i32>} : memref<8x1xf32, #tpu.memory_space<vmem>>, vector<8x1xf32>,
      } else {
      }
      %c0_54 = arith.constant 0 : index
      %c0_55 = arith.constant 0 : index
      %70 = vector.load %arg12[%c0_54, %c0_55] : memref<8x1xf32, #tpu.memory_space<vmem>>, vector<8x1xf32>
      %71 = vector.broadcast %70 : vector<8x1xf32> to vector<8x256xf32>
      %72 = arith.mulf %60, %71 : vector<8x256xf32>
      %c0_56 = arith.constant 0 : index
      %c0_57 = arith.constant 0 : index
      %73 = vector.load %arg13[%c0_56, %c0_57] : memref<8x1xf32, #tpu.memory_space<vmem>>, vector<8x1xf32>
      %74 = vector.broadcast %73 : vector<8x1xf32> to vector<8x256xf32>
      %75 = arith.addf %72, %74 : vector<8x256xf32>
      %cst_58 = arith.constant 0.000000e+00 : f32
      %76 = vector.broadcast %cst_58 : f32 to vector<8x256xf32>
      %77 = arith.maximumf %75, %76 : vector<8x256xf32>
      %78 = arith.truncf %77 : vector<8x256xf32> to vector<8x256xbf16>
      %cst_59 = arith.constant 0.000000e+00 : bf16
      %79 = vector.broadcast %cst_59 : bf16 to vector<8x32xbf16>
      %80 = tpu.concatenate %79, %78, %79 in 1 : vector<8x32xbf16>, vector<8x256xbf16>, vector<8x32xbf16> -> vector<8x320xbf16>
      %c0_60 = arith.constant 0 : index
      %c0_61 = arith.constant 0 : index
      %c0_62 = arith.constant 0 : index
      %81 = vector.load %arg9[%c0_60, %c0_61, %c0_62] : memref<1x8x320xbf16, #tpu.memory_space<vmem>>, vector<1x8x320xbf16>
      %82 = vector.shape_cast %81 : vector<1x8x320xbf16> to vector<8x320xbf16>
      %83 = vector.shape_cast %80 : vector<8x320xbf16> to vector<1x8x320xbf16>
      tpu.vector_store %arg9[%c0_60, %c0_61, %c0_62], %83 {strides = array<i32>} : memref<1x8x320xbf16, #tpu.memory_space<vmem>>, vector<1x8x320xbf16>,
    } else {
    }
    return
  }
  func.func @transform_0(%arg0: i32, %arg1: i32, %arg2: i32) -> (i32, i32, i32) {
    %c0_i32 = arith.constant 0 : i32
    %c0_i32_0 = arith.constant 0 : i32
    %c0_i32_1 = arith.constant 0 : i32
    return %arg2, %c0_i32, %c0_i32_0 : i32, i32, i32
  }
  func.func @transform_1(%arg0: i32, %arg1: i32, %arg2: i32) -> (i32, i32, i32) {
    %c0_i32 = arith.constant 0 : i32
    %c0_i32_0 = arith.constant 0 : i32
    %c0_i32_1 = arith.constant 0 : i32
    return %c0_i32, %arg0, %c0_i32_0 : i32, i32, i32
  }
  func.func @transform_2(%arg0: i32, %arg1: i32, %arg2: i32) -> (i32, i32) {
    %c0_i32 = arith.constant 0 : i32
    %c0_i32_0 = arith.constant 0 : i32
    return %arg0, %c0_i32 : i32, i32
  }
  func.func @transform_3(%arg0: i32, %arg1: i32, %arg2: i32) -> (i32, i32) {
    %c0_i32 = arith.constant 0 : i32
    %c0_i32_0 = arith.constant 0 : i32
    %c0_i32_1 = arith.constant 0 : i32
    return %c0_i32, %c0_i32_0 : i32, i32
  }
  func.func @transform_4(%arg0: i32, %arg1: i32, %arg2: i32) -> (i32, i32) {
    %c0_i32 = arith.constant 0 : i32
    %c0_i32_0 = arith.constant 0 : i32
    return %arg0, %c0_i32 : i32, i32
  }
  func.func @transform_5(%arg0: i32, %arg1: i32, %arg2: i32) -> (i32, i32) {
    %c0_i32 = arith.constant 0 : i32
    %c0_i32_0 = arith.constant 0 : i32
    return %arg0, %c0_i32 : i32, i32
  }
  func.func @transform_6(%arg0: i32, %arg1: i32, %arg2: i32) -> (i32, i32, i32) {
    %0 = arith.muli %arg2, %arg1 : i32
    %c0_i32 = arith.constant 0 : i32
    %c0_i32_0 = arith.constant 0 : i32
    return %0, %arg0, %c0_i32 : i32, i32, i32
  }
}

</mosaic_0001>

<llo_original>
// kernel: in_conv_forward.3
$region0: #{in_conv_forward.3}
  #allocation0 [shape = 'u32[]', space=smem, size = 0x4, offset = 0x4, fixed_abs, tag = 'smem constant byte address 0x4 - core index']
  #allocation1 [shape = 'u32[144,128]{1,0:T(1,128)}', space=vmem, size = 0x12000, scoped, tag = 'internal scratch']
  #allocation2 [shape = 'f32[8,1]{1,0:T(8,128)}', space=vmem, size = 0x1000, scoped, tag = 'scratch operand']
  #allocation3 [shape = 'f32[8,1]{1,0:T(8,128)}', space=vmem, size = 0x1000, scoped, tag = 'scratch operand']
  #allocation4 [shape = 'f32[8,1]{1,0:T(8,128)}', space=vmem, size = 0x1000, scoped, tag = 'scratch operand']
  #allocation5 [shape = 'f32[8,1]{1,0:T(8,128)}', space=vmem, size = 0x1000, scoped, tag = 'scratch operand']
  %s0 = inlined_call_operand.vmem [shape: bf16[2,8,320], index: 0, kind: input, shape index: {}]
  %s1 = inlined_call_operand.vmem [shape: bf16[9,8,8], index: 1, kind: input, shape index: {}]
  %s2 = inlined_call_operand.vmem [shape: f32[8,256], index: 2, kind: input, shape index: {}]
  %s3 = inlined_call_operand.vmem [shape: f32[2,256], index: 3, kind: input, shape index: {}]
  %s4 = inlined_call_operand.vmem [shape: f32[8,1], index: 4, kind: input, shape index: {}]
  %s5 = inlined_call_operand.vmem [shape: f32[8,1], index: 5, kind: input, shape index: {}]
  %s6 = inlined_call_operand.vmem [shape: bf16[2,8,320], index: 6, kind: output, shape index: {}]
  %s7 = sld [smem:[#allocation0]]
  $region73: #{in_conv_forward.3} parent=0
    _
  %s9 = ssub.s32 1, %s7
  %s10 = scalar_select 0, %s9, %s7
  loop: start=0, step=1, limit=6
  $region2: #{in_conv_forward.3} parent=0 // loop_pre_header
    _
  $region3: #{in_conv_forward.3} parent=0 // loop_header
    %s12 = sphi 0, %s16
    %p13 = scmp.ge.s32.totalorder %s12, 6
    %s19 = sphi 0, %s38
    %s20 = sphi 0, %s34
    %s21 = sphi 0, %s30
    %s22 = sphi 0, %s19
    %s23 = sphi 0, %s20
    %s24 = sphi 0, %s21
    %s25 = sphi 0, %s22
    %s26 = sphi 0, %s23
    %s27 = sphi 0, %s24
    %s41 = sphi 0, %s43
    %s44 = sphi 0, %s41
    %s45 = sphi 0, %s44
    %s61 = sphi 0, %s45
    %s67 = sphi 0, %s69
    %s70 = sphi 0, %s67
    %s71 = sphi 0, %s70
    %s87 = sphi 0, %s71
    %s93 = sphi 0, %s95
    %s96 = sphi 0, %s93
    %s97 = sphi 0, %s96
    %s113 = sphi 0, %s97
    %s117 = sphi 0, %s117
    %s119 = sphi 0, %s117
    %s120 = sphi 0, %s119
    %s134 = sphi 0, %s120
    %s140 = sphi 0, %s142
    %s143 = sphi 0, %s140
    %s144 = sphi 0, %s143
    %s160 = sphi 0, %s144
    %s166 = sphi 0, %s168
    %s169 = sphi 0, %s166
    %s170 = sphi 0, %s169
    %s186 = sphi 0, %s170
    %s196 = sphi 0, %s198
    %s199 = sphi 0, %s196
    %s200 = sphi 0, %s199
    %s216 = sphi 0, %s200
  $region4: #{in_conv_forward.3} parent=0 // loop_header_branch
    %15 = sbr.rel (%p13) target = $region8
  $region5: #{in_conv_forward.3} parent=0 // loop_body
    %s17 = ssub.s32 %s12, 1
    %s18 = ssub.s32 %s12, 2
    %s28 = sadd.s32 1, %s21
    %p29 = scmp.ge.s32.totalorder %s28, 2
    %s30 = scalar_select %p29, 0, %s28
    %s31 = sadd.s32 1, %s20
    %s32 = scalar_select %p29, %s31, %s20
    %p33 = scmp.ge.s32.totalorder %s32, 2
    %s34 = scalar_select %p33, 0, %s32
    %s35 = sadd.s32 1, %s19
    %s36 = scalar_select %p33, %s35, %s19
    %p37 = scmp.ge.s32.totalorder %s36, 1
    %s38 = scalar_select %p37, 0, %s36
    %s39 = ssub.s32 %s21, %s30
    %p40 = scmp.eq.s32.totalorder %s39, 0
    %s42 = sadd.s32 %s41, 1
    %s43 = scalar_select %p40, %s41, %s42
    %p46 = pneg %p40
    %p47 = scmp.eq.s32.totalorder %s12, 3
    %p48 = por %p46, %p47
    %p49 = scmp.ne.s32.totalorder %s41, %s44
    %p50 = scmp.eq.s32.totalorder %s12, 0
    %p51 = por %p49, %p50
    %p52 = scmp.ne.s32.totalorder %s41, %s44
    %p53 = scmp.eq.s32.totalorder %s17, 3
    %p54 = por %p52, %p53
    %p55 = scmp.ne.s32.totalorder %s44, %s45
    %p56 = scmp.eq.s32.totalorder %s17, 0
    %p57 = por %p55, %p56
    %p58 = scmp.ne.s32.totalorder %s44, %s45
    %p59 = scmp.eq.s32.totalorder %s18, 3
    %p60 = por %p58, %p59
    %p62 = scmp.ne.s32.totalorder %s45, %s61
    %p63 = scmp.eq.s32.totalorder %s18, 0
    %p64 = por %p62, %p63
    %s65 = ssub.s32 %s19, %s38
    %p66 = scmp.eq.s32.totalorder %s65, 0
    %s68 = sadd.s32 %s67, 1
    %s69 = scalar_select %p66, %s67, %s68
    %p72 = pneg %p66
    %p73 = scmp.eq.s32.totalorder %s12, 3
    %p74 = por %p72, %p73
    %p75 = scmp.ne.s32.totalorder %s67, %s70
    %p76 = scmp.eq.s32.totalorder %s12, 0
    %p77 = por %p75, %p76
    %p78 = scmp.ne.s32.totalorder %s67, %s70
    %p79 = scmp.eq.s32.totalorder %s17, 3
    %p80 = por %p78, %p79
    %p81 = scmp.ne.s32.totalorder %s70, %s71
    %p82 = scmp.eq.s32.totalorder %s17, 0
    %p83 = por %p81, %p82
    %p84 = scmp.ne.s32.totalorder %s70, %s71
    %p85 = scmp.eq.s32.totalorder %s18, 3
    %p86 = por %p84, %p85
    %p88 = scmp.ne.s32.totalorder %s71, %s87
    %p89 = scmp.eq.s32.totalorder %s18, 0
    %p90 = por %p88, %p89
    %s91 = ssub.s32 %s19, %s38
    %p92 = scmp.eq.s32.totalorder %s91, 0
    %s94 = sadd.s32 %s93, 1
    %s95 = scalar_select %p92, %s93, %s94
    %p98 = pneg %p92
    %p99 = scmp.eq.s32.totalorder %s12, 3
    %p100 = por %p98, %p99
    %p101 = scmp.ne.s32.totalorder %s93, %s96
    %p102 = scmp.eq.s32.totalorder %s12, 0
    %p103 = por %p101, %p102
    %p104 = scmp.ne.s32.totalorder %s93, %s96
    %p105 = scmp.eq.s32.totalorder %s17, 3
    %p106 = por %p104, %p105
    %p107 = scmp.ne.s32.totalorder %s96, %s97
    %p108 = scmp.eq.s32.totalorder %s17, 0
    %p109 = por %p107, %p108
    %p110 = scmp.ne.s32.totalorder %s96, %s97
    %p111 = scmp.eq.s32.totalorder %s18, 3
    %p112 = por %p110, %p111
    %p114 = scmp.ne.s32.totalorder %s97, %s113
    %p115 = scmp.eq.s32.totalorder %s18, 0
    %p116 = por %p114, %p115
    %s118 = sadd.s32 %s117, 1
    %p121 = scmp.eq.s32.totalorder %s12, 3
    %p122 = scmp.ne.s32.totalorder %s117, %s119
    %p123 = scmp.eq.s32.totalorder %s12, 0
    %p124 = por %p122, %p123
    %p125 = scmp.ne.s32.totalorder %s117, %s119
    %p126 = scmp.eq.s32.totalorder %s17, 3
    %p127 = por %p125, %p126
    %p128 = scmp.ne.s32.totalorder %s119, %s120
    %p129 = scmp.eq.s32.totalorder %s17, 0
    %p130 = por %p128, %p129
    %p131 = scmp.ne.s32.totalorder %s119, %s120
    %p132 = scmp.eq.s32.totalorder %s18, 3
    %p133 = por %p131, %p132
    %p135 = scmp.ne.s32.totalorder %s120, %s134
    %p136 = scmp.eq.s32.totalorder %s18, 0
    %p137 = por %p135, %p136
    %s138 = ssub.s32 %s19, %s38
    %p139 = scmp.eq.s32.totalorder %s138, 0
    %s141 = sadd.s32 %s140, 1
    %s142 = scalar_select %p139, %s140, %s141
    %p145 = pneg %p139
    %p146 = scmp.eq.s32.totalorder %s12, 3
    %p147 = por %p145, %p146
    %p148 = scmp.ne.s32.totalorder %s140, %s143
    %p149 = scmp.eq.s32.totalorder %s12, 0
    %p150 = por %p148, %p149
    %p151 = scmp.ne.s32.totalorder %s140, %s143
    %p152 = scmp.eq.s32.totalorder %s17, 3
    %p153 = por %p151, %p152
    %p154 = scmp.ne.s32.totalorder %s143, %s144
    %p155 = scmp.eq.s32.totalorder %s17, 0
    %p156 = por %p154, %p155
    %p157 = scmp.ne.s32.totalorder %s143, %s144
    %p158 = scmp.eq.s32.totalorder %s18, 3
    %p159 = por %p157, %p158
    %p161 = scmp.ne.s32.totalorder %s144, %s160
    %p162 = scmp.eq.s32.totalorder %s18, 0
    %p163 = por %p161, %p162
    %s164 = ssub.s32 %s19, %s38
    %p165 = scmp.eq.s32.totalorder %s164, 0
    %s167 = sadd.s32 %s166, 1
    %s168 = scalar_select %p165, %s166, %s167
    %p171 = pneg %p165
    %p172 = scmp.eq.s32.totalorder %s12, 3
    %p173 = por %p171, %p172
    %p174 = scmp.ne.s32.totalorder %s166, %s169
    %p175 = scmp.eq.s32.totalorder %s12, 0
    %p176 = por %p174, %p175
    %p177 = scmp.ne.s32.totalorder %s166, %s169
    %p178 = scmp.eq.s32.totalorder %s17, 3
    %p179 = por %p177, %p178
    %p180 = scmp.ne.s32.totalorder %s169, %s170
    %p181 = scmp.eq.s32.totalorder %s17, 0
    %p182 = por %p180, %p181
    %p183 = scmp.ne.s32.totalorder %s169, %s170
    %p184 = scmp.eq.s32.totalorder %s18, 3
    %p185 = por %p183, %p184
    %p187 = scmp.ne.s32.totalorder %s170, %s186
    %p188 = scmp.eq.s32.totalorder %s18, 0
    %p189 = por %p187, %p188
    %s190 = smul.u32 %s21, %s20
    %s191 = smul.u32 %s30, %s34
    %s192 = ssub.s32 %s190, %s191
    %s193 = ssub.s32 %s19, %s38
    %s194 = sor.u32 %s192, %s193
    %p195 = scmp.eq.s32.totalorder %s194, 0
    %s197 = sadd.s32 %s196, 1
    %s198 = scalar_select %p195, %s196, %s197
    %p201 = pneg %p195
    %p202 = scmp.eq.s32.totalorder %s12, 3
    %p203 = por %p201, %p202
    %p204 = scmp.ne.s32.totalorder %s196, %s199
    %p205 = scmp.eq.s32.totalorder %s12, 0
    %p206 = por %p204, %p205
    %p207 = scmp.ne.s32.totalorder %s196, %s199
    %p208 = scmp.eq.s32.totalorder %s17, 3
    %p209 = por %p207, %p208
    %p210 = scmp.ne.s32.totalorder %s199, %s200
    %p211 = scmp.eq.s32.totalorder %s17, 0
    %p212 = por %p210, %p211
    %p213 = scmp.ne.s32.totalorder %s199, %s200
    %p214 = scmp.eq.s32.totalorder %s18, 3
    %p215 = por %p213, %p214
    %p217 = scmp.ne.s32.totalorder %s200, %s216
    %p218 = scmp.eq.s32.totalorder %s18, 0
    %p219 = por %p217, %p218
    %p220 = scmp.le.s32.totalorder 1, %s12
    %p221 = scmp.lt.s32.totalorder %s12, 5
    %p222 = pnand %p220, %p221
    %p223 = pneg %p222
    // Predicated region
    $region9: #{in_conv_forward.3} parent=5 // pred_check
      _
    $region10: #{in_conv_forward.3} parent=5 // pred_check_branch
      %225 = sbr.rel (%p222) target = $region12
    $region11: #{in_conv_forward.3} parent=5 // pred_region
      %s226 = ssub.s32 %s12, 1
      // Predicated region
      $region13: #{in_conv_forward.3} parent=11 // pred_check
        %p227 = pneg %p83
      $region14: #{in_conv_forward.3} parent=11 // pred_check_branch
        %229 = sbr.rel (%p227) target = $region16
      $region15: #{in_conv_forward.3} parent=11 // pred_region
        %p230 = scmp.lt.s32.totalorder %s22, 0
        %s231 = scalar_select %p230, %s22, 0
        %s232 = smul.addr %s231, 4
        %s233 = scalar_lea.vmem %s1, %s232
      $region16: #{in_conv_forward.3} parent=11 // pred_fallthru
        _
      // Predicated region
      $region17: #{in_conv_forward.3} parent=11 // pred_check
        %p234 = pneg %p109
      $region18: #{in_conv_forward.3} parent=11 // pred_check_branch
        %236 = sbr.rel (%p234) target = $region20
      $region19: #{in_conv_forward.3} parent=11 // pred_region
        %p237 = scmp.lt.s32.totalorder %s22, 0
        %s238 = scalar_select %p237, %s22, 0
        %s239 = smul.addr %s238, 2
        %s240 = smul.addr %s239, 8
        %s241 = scalar_lea.vmem %s2, %s240
      $region20: #{in_conv_forward.3} parent=11 // pred_fallthru
        _
      // Predicated region
      $region21: #{in_conv_forward.3} parent=11 // pred_check
        %p242 = pneg %p130
      $region22: #{in_conv_forward.3} parent=11 // pred_check_branch
        %244 = sbr.rel (%p242) target = $region24
      $region23: #{in_conv_forward.3} parent=11 // pred_region
        _
      $region24: #{in_conv_forward.3} parent=11 // pred_fallthru
        _
      // Predicated region
      $region25: #{in_conv_forward.3} parent=11 // pred_check
        %p245 = pneg %p156
      $region26: #{in_conv_forward.3} parent=11 // pred_check_branch
        %247 = sbr.rel (%p245) target = $region28
      $region27: #{in_conv_forward.3} parent=11 // pred_region
        %p248 = scmp.lt.s32.totalorder %s22, 0
        %s249 = scalar_select %p248, %s22, 0
        %s250 = smul.addr %s249, 8
        %s251 = scalar_lea.vmem %s4, %s250
      $region28: #{in_conv_forward.3} parent=11 // pred_fallthru
        _
      // Predicated region
      $region29: #{in_conv_forward.3} parent=11 // pred_check
        %p252 = pneg %p182
      $region30: #{in_conv_forward.3} parent=11 // pred_check_branch
        %254 = sbr.rel (%p252) target = $region32
      $region31: #{in_conv_forward.3} parent=11 // pred_region
        %p255 = scmp.lt.s32.totalorder %s22, 0
        %s256 = scalar_select %p255, %s22, 0
        %s257 = smul.addr %s256, 8
        %s258 = scalar_lea.vmem %s5, %s257
      $region32: #{in_conv_forward.3} parent=11 // pred_fallthru
        _
    $region12: #{in_conv_forward.3} parent=5 // pred_fallthru
      _
    %p259 = scmp.lt.s32.totalorder %s12, 4
    // Predicated region
    $region33: #{in_conv_forward.3} parent=5 // pred_check
      %p260 = pneg %p259
    $region34: #{in_conv_forward.3} parent=5 // pred_check_branch
      %262 = sbr.rel (%p260) target = $region36
    $region35: #{in_conv_forward.3} parent=5 // pred_region
      // Predicated region
      $region37: #{in_conv_forward.3} parent=35 // pred_check
        %p263 = pneg %p51
      $region38: #{in_conv_forward.3} parent=35 // pred_check_branch
        %265 = sbr.rel (%p263) target = $region40
      $region39: #{in_conv_forward.3} parent=35 // pred_region
        %p266 = scmp.lt.s32.totalorder %s21, 1
        %s267 = scalar_select %p266, %s21, 1
        %s268 = smul.addr %s267, 3
        %s269 = smul.addr %s268, 4
        %s270 = scalar_lea.vmem %s0, %s269
      $region40: #{in_conv_forward.3} parent=35 // pred_fallthru
        _
    $region36: #{in_conv_forward.3} parent=5 // pred_fallthru
      _
    %p271 = scmp.le.s32.totalorder 1, %s12
    %p272 = scmp.lt.s32.totalorder %s12, 5
    %p273 = pnand %p271, %p272
    %p274 = pneg %p273
    // Predicated region
    $region41: #{in_conv_forward.3} parent=5 // pred_check
      _
    $region42: #{in_conv_forward.3} parent=5 // pred_check_branch
      %276 = sbr.rel (%p273) target = $region44
    $region43: #{in_conv_forward.3} parent=5 // pred_region
      %s277 = ssub.s32 %s12, 1
      %p278 = scmp.lt.s32.totalorder %s24, 1
      %s279 = scalar_select %p278, %s24, 1
      %s280 = smul.addr %s279, 3
      %s281 = smul.addr %s280, 4
      %s282 = scalar_lea.vmem %s0, %s281
      %p283 = pneg %p57
      %p284 = pneg %p54
      %p285 = scmp.lt.s32.totalorder %s22, 0
      %s286 = scalar_select %p285, %s22, 0
      %s287 = smul.addr %s286, 4
      %s288 = scalar_lea.vmem %s1, %s287
      %p289 = pneg %p83
      %p290 = pneg %p80
      %p291 = scmp.lt.s32.totalorder %s22, 0
      %s292 = scalar_select %p291, %s22, 0
      %s293 = smul.addr %s292, 2
      %s294 = smul.addr %s293, 8
      %s295 = scalar_lea.vmem %s2, %s294
      %p296 = pneg %p109
      %p297 = pneg %p106
      %p298 = pneg %p130
      %p299 = pneg %p127
      %p300 = scmp.lt.s32.totalorder %s22, 0
      %s301 = scalar_select %p300, %s22, 0
      %s302 = smul.addr %s301, 8
      %s303 = scalar_lea.vmem %s4, %s302
      %p304 = pneg %p156
      %p305 = pneg %p153
      %p306 = scmp.lt.s32.totalorder %s22, 0
      %s307 = scalar_select %p306, %s22, 0
      %s308 = smul.addr %s307, 8
      %s309 = scalar_lea.vmem %s5, %s308
      %p310 = pneg %p182
      %p311 = pneg %p179
      %p312 = pneg %p212
      %p313 = pneg %p209
      %s314 = smul.u32 %s24, %s23
      %p315 = scmp.lt.s32.totalorder %s314, 1
      %s316 = scalar_select %p315, %s314, 1
      %p317 = scmp.lt.s32.totalorder %s22, 0
      %s318 = scalar_select %p317, %s22, 0
      %s319 = smul.addr %s318, 3
      %s320 = smul.addr %s316, 3
      %s321 = sadd.s32 %s319, %s320
      %s322 = smul.addr %s321, 4
      %s323 = scalar_lea.vmem %s6, %s322
      %p324 = scmp.lt.s32.totalorder %s24, 1
      %s325 = scalar_select %p324, %s24, 1
      %s326 = smul.addr %s325, 3
      %s327 = smul.addr %s326, 4
      %s328 = scalar_lea.vmem %s0, %s327
      %p329 = scmp.lt.s32.totalorder %s22, 0
      %s330 = scalar_select %p329, %s22, 0
      %s331 = smul.addr %s330, 4
      %s332 = scalar_lea.vmem %s1, %s331
      %p333 = scmp.lt.s32.totalorder %s22, 0
      %s334 = scalar_select %p333, %s22, 0
      %s335 = smul.addr %s334, 2
      %s336 = smul.addr %s335, 8
      %s337 = scalar_lea.vmem %s2, %s336
      %p338 = scmp.lt.s32.totalorder %s22, 0
      %s339 = scalar_select %p338, %s22, 0
      %s340 = smul.addr %s339, 8
      %s341 = scalar_lea.vmem %s4, %s340
      %p342 = scmp.lt.s32.totalorder %s22, 0
      %s343 = scalar_select %p342, %s22, 0
      %s344 = smul.addr %s343, 8
      %s345 = scalar_lea.vmem %s5, %s344
      %s346 = smul.u32 %s24, %s23
      %p347 = scmp.lt.s32.totalorder %s346, 1
      %s348 = scalar_select %p347, %s346, 1
      %p349 = scmp.lt.s32.totalorder %s22, 0
      %s350 = scalar_select %p349, %s22, 0
      %s351 = smul.addr %s350, 3
      %s352 = smul.addr %s348, 3
      %s353 = sadd.s32 %s351, %s352
      %s354 = smul.addr %s353, 4
      %s355 = scalar_lea.vmem %s6, %s354
      %s356 = smul.u32 %s24, %s23
      %v358 = vld [vmem:[%s337] sm:$0xff]
      %v359 = vld [vmem:[%s337 + $0x8] sm:$0xff]
      %v360 = vld [vmem:[%s328] sm:$0xff]
      %v361 = vld [vmem:[%s328 + $0x8] sm:$0xf]
      %v362 = vld [vmem:[%s332] sm:$0xf]
      %s363 = scalar_lea.vmem %s332, 12
      %v364 = vld [vmem:[%s363] sm:$0xf]
      %v367 = vunpack.c.l.b16 %v360
      %v368 = vunpack.c.h.b16 %v360
      %v369 = vunpack.c.l.b16 %v361
      %v370 = vpack.c.b16 %v367, %v367
      %v371 = vpack.c.b16 %v368, %v368
      %v372 = vpack.c.b16 %v369, %v369
      %373 = vrot.lane.b32.xlu0 %v370, 97
      %v374 = vpop.permute.xlu0 %373
      %375 = vrot.lane.b32.xlu0 %v371, 97
      %v376 = vpop.permute.xlu0 %375
      %377 = vrot.lane.b32.xlu0 %v372, 97
      %v378 = vpop.permute.xlu0 %377
      %vm379 = vcmask 793600
      %v380 = vsel %vm379, %v374, %v376
      %v381 = vsel %vm379, %v376, %v378
      %vm382 = vcmask 64512
      %v384 = vsel %vm382, %v364, 0
      %vm386 = vcmask 1043456
      %v388 = vsel %vm386, %v380, 0
      %v391 = vsel %vm386, %v381, 0
      %393 = vmatprep.subr.bf16.mxu0 0
      %394 = vmatpush1.bf16.msra.mxu0 0
      %395 = vmatprep.subr.bf16.mxu0 0
      %396 = vmatpush1.bf16.msra.mxu0 0
      %397 = vmatprep.subr.bf16.mxu0 0
      %398 = vmatpush1.bf16.msra.mxu0 0
      %399 = vmatprep.subr.bf16.mxu0 0
      %400 = vmatpush1.bf16.msra.mxu0 0
      %401 = vmatprep.subr.bf16.mxu0 0
      %402 = vmatpush1.bf16.msra.mxu0 0
      %403 = vmatprep.subr.bf16.mxu0 0
      %404 = vmatpush1.bf16.msra.mxu0 0
      %405 = vmatprep.subr.bf16.mxu0 0
      %406 = vmatpush1.bf16.msra.mxu0 0
      %407 = vmatprep.subr.bf16.mxu0 %v391
      %408 = vmatpush1.bf16.msra.mxu0 %v388
      %409 = vmatprep.subr.bf16.mxu0 0
      %410 = vmatpush2.bf16.msra.mxu0 0
      %411 = vmatprep.subr.bf16.mxu0 0
      %412 = vmatpush2.bf16.msra.mxu0 0
      %413 = vmatprep.subr.bf16.mxu0 0
      %414 = vmatpush2.bf16.msra.mxu0 0
      %415 = vmatprep.subr.bf16.mxu0 0
      %416 = vmatpush2.bf16.msra.mxu0 0
      %417 = vmatprep.subr.bf16.mxu0 0
      %418 = vmatpush2.bf16.msra.mxu0 0
      %419 = vmatprep.subr.bf16.mxu0 0
      %420 = vmatpush2.bf16.msra.mxu0 0
      %421 = vmatprep.subr.bf16.mxu0 0
      %422 = vmatpush2.bf16.msra.mxu0 0
      %423 = vmatprep.subr.bf16.mxu0 0
      %424 = vmatpush2.bf16.msra.mxu0 0
      %425 = vmatprep.mubr.bf16.mxu0 0
      %426 = vmatmul.mubr.bf16.gmra.mxu0 %v384
      %v427 = vpop.f32.mrf.mxu0
      %v428 = vadd.f32 0.0, %v427
      %v429 = vpop.f32.mrf.mxu0
      %v430 = vadd.f32 0.0, %v429
      %v431 = vpop.f32.mrf.mxu0
      %v432 = vpop.f32.mrf.mxu0
      %433 = vdwg.mxu0
      %434 = vrot.lane.b32.xlu0 %v370, 113
      %v435 = vpop.permute.xlu0 %434
      %436 = vrot.lane.b32.xlu0 %v371, 113
      %v437 = vpop.permute.xlu0 %436
      %438 = vrot.lane.b32.xlu0 %v372, 113
      %v439 = vpop.permute.xlu0 %438
      %vm440 = vcmask 924672
      %v441 = vsel %vm440, %v435, %v437
      %v442 = vsel %vm440, %v437, %v439
      %v444 = vsel %vm382, %v362, 0
      %v447 = vsel %vm386, %v441, 0
      %v450 = vsel %vm386, %v442, 0
      %452 = vmatprep.subr.bf16.mxu0 0
      %453 = vmatpush1.bf16.msra.mxu0 0
      %454 = vmatprep.subr.bf16.mxu0 0
      %455 = vmatpush1.bf16.msra.mxu0 0
      %456 = vmatprep.subr.bf16.mxu0 0
      %457 = vmatpush1.bf16.msra.mxu0 0
      %458 = vmatprep.subr.bf16.mxu0 0
      %459 = vmatpush1.bf16.msra.mxu0 0
      %460 = vmatprep.subr.bf16.mxu0 0
      %461 = vmatpush1.bf16.msra.mxu0 0
      %462 = vmatprep.subr.bf16.mxu0 0
      %463 = vmatpush1.bf16.msra.mxu0 0
      %464 = vmatprep.subr.bf16.mxu0 0
      %465 = vmatpush1.bf16.msra.mxu0 0
      %466 = vmatprep.subr.bf16.mxu0 %v450
      %467 = vmatpush1.bf16.msra.mxu0 %v447
      %468 = vmatprep.subr.bf16.mxu0 0
      %469 = vmatpush2.bf16.msra.mxu0 0
      %470 = vmatprep.subr.bf16.mxu0 0
      %471 = vmatpush2.bf16.msra.mxu0 0
      %472 = vmatprep.subr.bf16.mxu0 0
      %473 = vmatpush2.bf16.msra.mxu0 0
      %474 = vmatprep.subr.bf16.mxu0 0
      %475 = vmatpush2.bf16.msra.mxu0 0
      %476 = vmatprep.subr.bf16.mxu0 0
      %477 = vmatpush2.bf16.msra.mxu0 0
      %478 = vmatprep.subr.bf16.mxu0 0
      %479 = vmatpush2.bf16.msra.mxu0 0
      %480 = vmatprep.subr.bf16.mxu0 0
      %481 = vmatpush2.bf16.msra.mxu0 0
      %482 = vmatprep.subr.bf16.mxu0 0
      %483 = vmatpush2.bf16.msra.mxu0 0
      %484 = vmatprep.mubr.bf16.mxu0 0
      %485 = vmatmul.mubr.bf16.gmra.mxu0 %v444
      %v486 = vpop.f32.mrf.mxu0
      %v487 = vadd.f32 %v428, %v486
      %v488 = vpop.f32.mrf.mxu0
      %v489 = vadd.f32 %v430, %v488
      %v490 = vpop.f32.mrf.mxu0
      %v491 = vpop.f32.mrf.mxu0
      %492 = vdwg.mxu0
      %s493 = scalar_lea.vmem %s332, 24
      %v494 = vld [vmem:[%s493] sm:$0xf]
      %495 = vrot.lane.b32.xlu0 %v370, 81
      %v496 = vpop.permute.xlu0 %495
      %497 = vrot.lane.b32.xlu0 %v371, 81
      %v498 = vpop.permute.xlu0 %497
      %499 = vrot.lane.b32.xlu0 %v372, 81
      %v500 = vpop.permute.xlu0 %499
      %vm501 = vcmask 662528
      %v502 = vsel %vm501, %v496, %v498
      %v503 = vsel %vm501, %v498, %v500
      %v505 = vsel %vm382, %v494, 0
      %v508 = vsel %vm386, %v502, 0
      %v511 = vsel %vm386, %v503, 0
      %513 = vmatprep.subr.bf16.mxu0 0
      %514 = vmatpush1.bf16.msra.mxu0 0
      %515 = vmatprep.subr.bf16.mxu0 0
      %516 = vmatpush1.bf16.msra.mxu0 0
      %517 = vmatprep.subr.bf16.mxu0 0
      %518 = vmatpush1.bf16.msra.mxu0 0
      %519 = vmatprep.subr.bf16.mxu0 0
      %520 = vmatpush1.bf16.msra.mxu0 0
      %521 = vmatprep.subr.bf16.mxu0 0
      %522 = vmatpush1.bf16.msra.mxu0 0
      %523 = vmatprep.subr.bf16.mxu0 0
      %524 = vmatpush1.bf16.msra.mxu0 0
      %525 = vmatprep.subr.bf16.mxu0 0
      %526 = vmatpush1.bf16.msra.mxu0 0
      %527 = vmatprep.subr.bf16.mxu0 %v511
      %528 = vmatpush1.bf16.msra.mxu0 %v508
      %529 = vmatprep.subr.bf16.mxu0 0
      %530 = vmatpush2.bf16.msra.mxu0 0
      %531 = vmatprep.subr.bf16.mxu0 0
      %532 = vmatpush2.bf16.msra.mxu0 0
      %533 = vmatprep.subr.bf16.mxu0 0
      %534 = vmatpush2.bf16.msra.mxu0 0
      %535 = vmatprep.subr.bf16.mxu0 0
      %536 = vmatpush2.bf16.msra.mxu0 0
      %537 = vmatprep.subr.bf16.mxu0 0
      %538 = vmatpush2.bf16.msra.mxu0 0
      %539 = vmatprep.subr.bf16.mxu0 0
      %540 = vmatpush2.bf16.msra.mxu0 0
      %541 = vmatprep.subr.bf16.mxu0 0
      %542 = vmatpush2.bf16.msra.mxu0 0
      %543 = vmatprep.subr.bf16.mxu0 0
      %544 = vmatpush2.bf16.msra.mxu0 0
      %545 = vmatprep.mubr.bf16.mxu0 0
      %546 = vmatmul.mubr.bf16.gmra.mxu0 %v505
      %v547 = vpop.f32.mrf.mxu0
      %v548 = vadd.f32 0.0, %v547
      %v549 = vpop.f32.mrf.mxu0
      %v550 = vadd.f32 0.0, %v549
      %v551 = vpop.f32.mrf.mxu0
      %v552 = vpop.f32.mrf.mxu0
      %553 = vdwg.mxu0
      %v554 = vadd.f32 %v487, %v548
      %v555 = vadd.f32 %v489, %v550
      %v556 = vld [vmem:[%s3] ss:$2 sm:$0x3]
      %v558 = vlaneseq
      %v559 = vshrl.u32 %v558, 7
      %v560 = vsub.s32 0, %v559
      %v561 = vrot.slane %v556, %v560
      %v562 = vlaneseq
      %v563 = vshrl.u32 %v562, 7
      %v564 = vsub.s32 1, %v563
      %v565 = vrot.slane %v556, %v564
      %v568 = vmul.f32 %v554, %v561
      %v569 = vmul.f32 %v555, %v565
      %v570 = vadd.f32 %v358, %v568
      %v571 = vadd.f32 %v359, %v569
      %s572 = scalar_lea.vmem %s332, 4
      %v573 = vld [vmem:[%s572] sm:$0xf]
      %s574 = scalar_lea.vmem %s332, 16
      %v575 = vld [vmem:[%s574] sm:$0xf]
      %576 = vrot.lane.b32.xlu0 %v370, 96
      %v577 = vpop.permute.xlu0 %576
      %578 = vrot.lane.b32.xlu0 %v371, 96
      %v579 = vpop.permute.xlu0 %578
      %580 = vrot.lane.b32.xlu0 %v372, 96
      %v581 = vpop.permute.xlu0 %580
      %vm582 = vcmask 785408
      %v583 = vsel %vm582, %v577, %v579
      %v584 = vsel %vm582, %v579, %v581
      %v586 = vsel %vm382, %v575, 0
      %v589 = vsel %vm386, %v583, 0
      %v592 = vsel %vm386, %v584, 0
      %594 = vmatprep.subr.bf16.mxu0 0
      %595 = vmatpush1.bf16.msra.mxu0 0
      %596 = vmatprep.subr.bf16.mxu0 0
      %597 = vmatpush1.bf16.msra.mxu0 0
      %598 = vmatprep.subr.bf16.mxu0 0
      %599 = vmatpush1.bf16.msra.mxu0 0
      %600 = vmatprep.subr.bf16.mxu0 0
      %601 = vmatpush1.bf16.msra.mxu0 0
      %602 = vmatprep.subr.bf16.mxu0 0
      %603 = vmatpush1.bf16.msra.mxu0 0
      %604 = vmatprep.subr.bf16.mxu0 0
      %605 = vmatpush1.bf16.msra.mxu0 0
      %606 = vmatprep.subr.bf16.mxu0 0
      %607 = vmatpush1.bf16.msra.mxu0 0
      %608 = vmatprep.subr.bf16.mxu0 %v592
      %609 = vmatpush1.bf16.msra.mxu0 %v589
      %610 = vmatprep.subr.bf16.mxu0 0
      %611 = vmatpush2.bf16.msra.mxu0 0
      %612 = vmatprep.subr.bf16.mxu0 0
      %613 = vmatpush2.bf16.msra.mxu0 0
      %614 = vmatprep.subr.bf16.mxu0 0
      %615 = vmatpush2.bf16.msra.mxu0 0
      %616 = vmatprep.subr.bf16.mxu0 0
      %617 = vmatpush2.bf16.msra.mxu0 0
      %618 = vmatprep.subr.bf16.mxu0 0
      %619 = vmatpush2.bf16.msra.mxu0 0
      %620 = vmatprep.subr.bf16.mxu0 0
      %621 = vmatpush2.bf16.msra.mxu0 0
      %622 = vmatprep.subr.bf16.mxu0 0
      %623 = vmatpush2.bf16.msra.mxu0 0
      %624 = vmatprep.subr.bf16.mxu0 0
      %625 = vmatpush2.bf16.msra.mxu0 0
      %626 = vmatprep.mubr.bf16.mxu0 0
      %627 = vmatmul.mubr.bf16.gmra.mxu0 %v586
      %v628 = vpop.f32.mrf.mxu0
      %v629 = vadd.f32 0.0, %v628
      %v630 = vpop.f32.mrf.mxu0
      %v631 = vadd.f32 0.0, %v630
      %v632 = vpop.f32.mrf.mxu0
      %v633 = vpop.f32.mrf.mxu0
      %634 = vdwg.mxu0
      %635 = vrot.lane.b32.xlu0 %v370, 112
      %v636 = vpop.permute.xlu0 %635
      %637 = vrot.lane.b32.xlu0 %v371, 112
      %v638 = vpop.permute.xlu0 %637
      %639 = vrot.lane.b32.xlu0 %v372, 112
      %v640 = vpop.permute.xlu0 %639
      %vm641 = vcmask 916480
      %v642 = vsel %vm641, %v636, %v638
      %v643 = vsel %vm641, %v638, %v640
      %v645 = vsel %vm382, %v573, 0
      %v648 = vsel %vm386, %v642, 0
      %v651 = vsel %vm386, %v643, 0
      %653 = vmatprep.subr.bf16.mxu0 0
      %654 = vmatpush1.bf16.msra.mxu0 0
      %655 = vmatprep.subr.bf16.mxu0 0
      %656 = vmatpush1.bf16.msra.mxu0 0
      %657 = vmatprep.subr.bf16.mxu0 0
      %658 = vmatpush1.bf16.msra.mxu0 0
      %659 = vmatprep.subr.bf16.mxu0 0
      %660 = vmatpush1.bf16.msra.mxu0 0
      %661 = vmatprep.subr.bf16.mxu0 0
      %662 = vmatpush1.bf16.msra.mxu0 0
      %663 = vmatprep.subr.bf16.mxu0 0
      %664 = vmatpush1.bf16.msra.mxu0 0
      %665 = vmatprep.subr.bf16.mxu0 0
      %666 = vmatpush1.bf16.msra.mxu0 0
      %667 = vmatprep.subr.bf16.mxu0 %v651
      %668 = vmatpush1.bf16.msra.mxu0 %v648
      %669 = vmatprep.subr.bf16.mxu0 0
      %670 = vmatpush2.bf16.msra.mxu0 0
      %671 = vmatprep.subr.bf16.mxu0 0
      %672 = vmatpush2.bf16.msra.mxu0 0
      %673 = vmatprep.subr.bf16.mxu0 0
      %674 = vmatpush2.bf16.msra.mxu0 0
      %675 = vmatprep.subr.bf16.mxu0 0
      %676 = vmatpush2.bf16.msra.mxu0 0
      %677 = vmatprep.subr.bf16.mxu0 0
      %678 = vmatpush2.bf16.msra.mxu0 0
      %679 = vmatprep.subr.bf16.mxu0 0
      %680 = vmatpush2.bf16.msra.mxu0 0
      %681 = vmatprep.subr.bf16.mxu0 0
      %682 = vmatpush2.bf16.msra.mxu0 0
      %683 = vmatprep.subr.bf16.mxu0 0
      %684 = vmatpush2.bf16.msra.mxu0 0
      %685 = vmatprep.mubr.bf16.mxu0 0
      %686 = vmatmul.mubr.bf16.gmra.mxu0 %v645
      %v687 = vpop.f32.mrf.mxu0
      %v688 = vadd.f32 %v629, %v687
      %v689 = vpop.f32.mrf.mxu0
      %v690 = vadd.f32 %v631, %v689
      %v691 = vpop.f32.mrf.mxu0
      %v692 = vpop.f32.mrf.mxu0
      %693 = vdwg.mxu0
      %s694 = scalar_lea.vmem %s332, 28
      %v695 = vld [vmem:[%s694] sm:$0xf]
      %696 = vrot.lane.b32.xlu0 %v370, 80
      %v697 = vpop.permute.xlu0 %696
      %698 = vrot.lane.b32.xlu0 %v371, 80
      %v699 = vpop.permute.xlu0 %698
      %700 = vrot.lane.b32.xlu0 %v372, 80
      %v701 = vpop.permute.xlu0 %700
      %vm702 = vcmask 654336
      %v703 = vsel %vm702, %v697, %v699
      %v704 = vsel %vm702, %v699, %v701
      %v706 = vsel %vm382, %v695, 0
      %v709 = vsel %vm386, %v703, 0
      %v712 = vsel %vm386, %v704, 0
      %714 = vmatprep.subr.bf16.mxu0 0
      %715 = vmatpush1.bf16.msra.mxu0 0
      %716 = vmatprep.subr.bf16.mxu0 0
      %717 = vmatpush1.bf16.msra.mxu0 0
      %718 = vmatprep.subr.bf16.mxu0 0
      %719 = vmatpush1.bf16.msra.mxu0 0
      %720 = vmatprep.subr.bf16.mxu0 0
      %721 = vmatpush1.bf16.msra.mxu0 0
      %722 = vmatprep.subr.bf16.mxu0 0
      %723 = vmatpush1.bf16.msra.mxu0 0
      %724 = vmatprep.subr.bf16.mxu0 0
      %725 = vmatpush1.bf16.msra.mxu0 0
      %726 = vmatprep.subr.bf16.mxu0 0
      %727 = vmatpush1.bf16.msra.mxu0 0
      %728 = vmatprep.subr.bf16.mxu0 %v712
      %729 = vmatpush1.bf16.msra.mxu0 %v709
      %730 = vmatprep.subr.bf16.mxu0 0
      %731 = vmatpush2.bf16.msra.mxu0 0
      %732 = vmatprep.subr.bf16.mxu0 0
      %733 = vmatpush2.bf16.msra.mxu0 0
      %734 = vmatprep.subr.bf16.mxu0 0
      %735 = vmatpush2.bf16.msra.mxu0 0
      %736 = vmatprep.subr.bf16.mxu0 0
      %737 = vmatpush2.bf16.msra.mxu0 0
      %738 = vmatprep.subr.bf16.mxu0 0
      %739 = vmatpush2.bf16.msra.mxu0 0
      %740 = vmatprep.subr.bf16.mxu0 0
      %741 = vmatpush2.bf16.msra.mxu0 0
      %742 = vmatprep.subr.bf16.mxu0 0
      %743 = vmatpush2.bf16.msra.mxu0 0
      %744 = vmatprep.subr.bf16.mxu0 0
      %745 = vmatpush2.bf16.msra.mxu0 0
      %746 = vmatprep.mubr.bf16.mxu0 0
      %747 = vmatmul.mubr.bf16.gmra.mxu0 %v706
      %v748 = vpop.f32.mrf.mxu0
      %v749 = vadd.f32 0.0, %v748
      %v750 = vpop.f32.mrf.mxu0
      %v751 = vadd.f32 0.0, %v750
      %v752 = vpop.f32.mrf.mxu0
      %v753 = vpop.f32.mrf.mxu0
      %754 = vdwg.mxu0
      %v755 = vadd.f32 %v688, %v749
      %v756 = vadd.f32 %v690, %v751
      %v757 = vadd.f32 %v570, %v755
      %v758 = vadd.f32 %v571, %v756
      %s759 = scalar_lea.vmem %s332, 8
      %v760 = vld [vmem:[%s759] sm:$0xf]
      %s761 = scalar_lea.vmem %s332, 20
      %v762 = vld [vmem:[%s761] sm:$0xf]
      %763 = vrot.lane.b32.xlu0 %v370, 95
      %v764 = vpop.permute.xlu0 %763
      %765 = vrot.lane.b32.xlu0 %v371, 95
      %v766 = vpop.permute.xlu0 %765
      %767 = vrot.lane.b32.xlu0 %v372, 95
      %v768 = vpop.permute.xlu0 %767
      %vm769 = vcmask 777216
      %v770 = vsel %vm769, %v764, %v766
      %v771 = vsel %vm769, %v766, %v768
      %v773 = vsel %vm382, %v762, 0
      %v776 = vsel %vm386, %v770, 0
      %v779 = vsel %vm386, %v771, 0
      %781 = vmatprep.subr.bf16.mxu0 0
      %782 = vmatpush1.bf16.msra.mxu0 0
      %783 = vmatprep.subr.bf16.mxu0 0
      %784 = vmatpush1.bf16.msra.mxu0 0
      %785 = vmatprep.subr.bf16.mxu0 0
      %786 = vmatpush1.bf16.msra.mxu0 0
      %787 = vmatprep.subr.bf16.mxu0 0
      %788 = vmatpush1.bf16.msra.mxu0 0
      %789 = vmatprep.subr.bf16.mxu0 0
      %790 = vmatpush1.bf16.msra.mxu0 0
      %791 = vmatprep.subr.bf16.mxu0 0
      %792 = vmatpush1.bf16.msra.mxu0 0
      %793 = vmatprep.subr.bf16.mxu0 0
      %794 = vmatpush1.bf16.msra.mxu0 0
      %795 = vmatprep.subr.bf16.mxu0 %v779
      %796 = vmatpush1.bf16.msra.mxu0 %v776
      %797 = vmatprep.subr.bf16.mxu0 0
      %798 = vmatpush2.bf16.msra.mxu0 0
      %799 = vmatprep.subr.bf16.mxu0 0
      %800 = vmatpush2.bf16.msra.mxu0 0
      %801 = vmatprep.subr.bf16.mxu0 0
      %802 = vmatpush2.bf16.msra.mxu0 0
      %803 = vmatprep.subr.bf16.mxu0 0
      %804 = vmatpush2.bf16.msra.mxu0 0
      %805 = vmatprep.subr.bf16.mxu0 0
      %806 = vmatpush2.bf16.msra.mxu0 0
      %807 = vmatprep.subr.bf16.mxu0 0
      %808 = vmatpush2.bf16.msra.mxu0 0
      %809 = vmatprep.subr.bf16.mxu0 0
      %810 = vmatpush2.bf16.msra.mxu0 0
      %811 = vmatprep.subr.bf16.mxu0 0
      %812 = vmatpush2.bf16.msra.mxu0 0
      %813 = vmatprep.mubr.bf16.mxu0 0
      %814 = vmatmul.mubr.bf16.gmra.mxu0 %v773
      %v815 = vpop.f32.mrf.mxu0
      %v816 = vadd.f32 0.0, %v815
      %v817 = vpop.f32.mrf.mxu0
      %v818 = vadd.f32 0.0, %v817
      %v819 = vpop.f32.mrf.mxu0
      %v820 = vpop.f32.mrf.mxu0
      %821 = vdwg.mxu0
      %822 = vrot.lane.b32.xlu0 %v370, 111
      %v823 = vpop.permute.xlu0 %822
      %824 = vrot.lane.b32.xlu0 %v371, 111
      %v825 = vpop.permute.xlu0 %824
      %826 = vrot.lane.b32.xlu0 %v372, 111
      %v827 = vpop.permute.xlu0 %826
      %vm828 = vcmask 908288
      %v829 = vsel %vm828, %v823, %v825
      %v830 = vsel %vm828, %v825, %v827
      %v832 = vsel %vm382, %v760, 0
      %v835 = vsel %vm386, %v829, 0
      %v838 = vsel %vm386, %v830, 0
      %840 = vmatprep.subr.bf16.mxu0 0
      %841 = vmatpush1.bf16.msra.mxu0 0
      %842 = vmatprep.subr.bf16.mxu0 0
      %843 = vmatpush1.bf16.msra.mxu0 0
      %844 = vmatprep.subr.bf16.mxu0 0
      %845 = vmatpush1.bf16.msra.mxu0 0
      %846 = vmatprep.subr.bf16.mxu0 0
      %847 = vmatpush1.bf16.msra.mxu0 0
      %848 = vmatprep.subr.bf16.mxu0 0
      %849 = vmatpush1.bf16.msra.mxu0 0
      %850 = vmatprep.subr.bf16.mxu0 0
      %851 = vmatpush1.bf16.msra.mxu0 0
      %852 = vmatprep.subr.bf16.mxu0 0
      %853 = vmatpush1.bf16.msra.mxu0 0
      %854 = vmatprep.subr.bf16.mxu0 %v838
      %855 = vmatpush1.bf16.msra.mxu0 %v835
      %856 = vmatprep.subr.bf16.mxu0 0
      %857 = vmatpush2.bf16.msra.mxu0 0
      %858 = vmatprep.subr.bf16.mxu0 0
      %859 = vmatpush2.bf16.msra.mxu0 0
      %860 = vmatprep.subr.bf16.mxu0 0
      %861 = vmatpush2.bf16.msra.mxu0 0
      %862 = vmatprep.subr.bf16.mxu0 0
      %863 = vmatpush2.bf16.msra.mxu0 0
      %864 = vmatprep.subr.bf16.mxu0 0
      %865 = vmatpush2.bf16.msra.mxu0 0
      %866 = vmatprep.subr.bf16.mxu0 0
      %867 = vmatpush2.bf16.msra.mxu0 0
      %868 = vmatprep.subr.bf16.mxu0 0
      %869 = vmatpush2.bf16.msra.mxu0 0
      %870 = vmatprep.subr.bf16.mxu0 0
      %871 = vmatpush2.bf16.msra.mxu0 0
      %872 = vmatprep.mubr.bf16.mxu0 0
      %873 = vmatmul.mubr.bf16.gmra.mxu0 %v832
      %v874 = vpop.f32.mrf.mxu0
      %v875 = vadd.f32 %v816, %v874
      %v876 = vpop.f32.mrf.mxu0
      %v877 = vadd.f32 %v818, %v876
      %v878 = vpop.f32.mrf.mxu0
      %v879 = vpop.f32.mrf.mxu0
      %880 = vdwg.mxu0
      %s881 = scalar_lea.vmem %s332, 32
      %v882 = vld [vmem:[%s881] sm:$0xf]
      %883 = vrot.lane.b32.xlu0 %v370, 79
      %v884 = vpop.permute.xlu0 %883
      %885 = vrot.lane.b32.xlu0 %v371, 79
      %v886 = vpop.permute.xlu0 %885
      %887 = vrot.lane.b32.xlu0 %v372, 79
      %v888 = vpop.permute.xlu0 %887
      %vm889 = vcmask 646144
      %v890 = vsel %vm889, %v884, %v886
      %v891 = vsel %vm889, %v886, %v888
      %v893 = vsel %vm382, %v882, 0
      %v896 = vsel %vm386, %v890, 0
      %v899 = vsel %vm386, %v891, 0
      %901 = vmatprep.subr.bf16.mxu0 0
      %902 = vmatpush1.bf16.msra.mxu0 0
      %903 = vmatprep.subr.bf16.mxu0 0
      %904 = vmatpush1.bf16.msra.mxu0 0
      %905 = vmatprep.subr.bf16.mxu0 0
      %906 = vmatpush1.bf16.msra.mxu0 0
      %907 = vmatprep.subr.bf16.mxu0 0
      %908 = vmatpush1.bf16.msra.mxu0 0
      %909 = vmatprep.subr.bf16.mxu0 0
      %910 = vmatpush1.bf16.msra.mxu0 0
      %911 = vmatprep.subr.bf16.mxu0 0
      %912 = vmatpush1.bf16.msra.mxu0 0
      %913 = vmatprep.subr.bf16.mxu0 0
      %914 = vmatpush1.bf16.msra.mxu0 0
      %915 = vmatprep.subr.bf16.mxu0 %v899
      %916 = vmatpush1.bf16.msra.mxu0 %v896
      %917 = vmatprep.subr.bf16.mxu0 0
      %918 = vmatpush2.bf16.msra.mxu0 0
      %919 = vmatprep.subr.bf16.mxu0 0
      %920 = vmatpush2.bf16.msra.mxu0 0
      %921 = vmatprep.subr.bf16.mxu0 0
      %922 = vmatpush2.bf16.msra.mxu0 0
      %923 = vmatprep.subr.bf16.mxu0 0
      %924 = vmatpush2.bf16.msra.mxu0 0
      %925 = vmatprep.subr.bf16.mxu0 0
      %926 = vmatpush2.bf16.msra.mxu0 0
      %927 = vmatprep.subr.bf16.mxu0 0
      %928 = vmatpush2.bf16.msra.mxu0 0
      %929 = vmatprep.subr.bf16.mxu0 0
      %930 = vmatpush2.bf16.msra.mxu0 0
      %931 = vmatprep.subr.bf16.mxu0 0
      %932 = vmatpush2.bf16.msra.mxu0 0
      %933 = vmatprep.mubr.bf16.mxu0 0
      %934 = vmatmul.mubr.bf16.gmra.mxu0 %v893
      %v935 = vpop.f32.mrf.mxu0
      %v936 = vadd.f32 0.0, %v935
      %v937 = vpop.f32.mrf.mxu0
      %v938 = vadd.f32 0.0, %v937
      %v939 = vpop.f32.mrf.mxu0
      %v940 = vpop.f32.mrf.mxu0
      %941 = vdwg.mxu0
      %v942 = vadd.f32 %v875, %v936
      %v943 = vadd.f32 %v877, %v938
      %s944 = scalar_lea.vmem %s3, 1
      %v945 = vld [vmem:[%s944] ss:$2 sm:$0x3]
      %v947 = vlaneseq
      %v948 = vshrl.u32 %v947, 7
      %v949 = vsub.s32 0, %v948
      %v950 = vrot.slane %v945, %v949
      %v951 = vlaneseq
      %v952 = vshrl.u32 %v951, 7
      %v953 = vsub.s32 1, %v952
      %v954 = vrot.slane %v945, %v953
      %v957 = vmul.f32 %v942, %v950
      %v958 = vmul.f32 %v943, %v954
      %v959 = vadd.f32 %v757, %v957
      %v960 = vadd.f32 %v758, %v958
      %p961 = scmp.eq.s32.totalorder %s23, 0
      // Predicated region
      $region45: #{in_conv_forward.3} parent=43 // pred_check
        %p962 = pneg %p961
      $region46: #{in_conv_forward.3} parent=43 // pred_check_branch
        %964 = sbr.rel (%p962) target = $region48
      $region47: #{in_conv_forward.3} parent=43 // pred_region
        %p965 = scmp.eq.s32.totalorder %s24, 0
        // Predicated region
        $region49: #{in_conv_forward.3} parent=47 // pred_check
          %p966 = pneg %p965
        $region50: #{in_conv_forward.3} parent=47 // pred_check_branch
          %968 = sbr.rel (%p966) target = $region52
        $region51: #{in_conv_forward.3} parent=47 // pred_region
          %vm969 = vcmask 7168
          %970 = vst.msk [vmem:[#allocation2] sm:$0xff] %vm969, 0.0
          %971 = vst.msk [vmem:[#allocation3] sm:$0xff] %vm969, 0.0
        $region52: #{in_conv_forward.3} parent=47 // pred_fallthru
          _
        %v972 = vld [vmem:[#allocation2] sm:$0xff]
        %v973 = vadd.f32 %v959, %v960
        %974 = vadd.xlane.f32.xlu0 %v973
        %v975 = vpop.xlane.xlu0 %974
        %v976 = vadd.f32 %v972, %v975
        %vm977 = vcmask 7168
        %978 = vst.msk [vmem:[#allocation2] sm:$0xff] %vm977, %v976
        %v979 = vld [vmem:[#allocation3] sm:$0xff]
        %v980 = vmul.f32 %v959, %v959
        %v981 = vmul.f32 %v960, %v960
        %v982 = vadd.f32 %v980, %v981
        %983 = vadd.xlane.f32.xlu0 %v982
        %v984 = vpop.xlane.xlu0 %983
        %v985 = vadd.f32 %v979, %v984
        %986 = vst.msk [vmem:[#allocation3] sm:$0xff] %vm977, %v985
      $region48: #{in_conv_forward.3} parent=43 // pred_fallthru
        _
      %p987 = scmp.eq.s32.totalorder %s23, 1
      // Predicated region
      $region53: #{in_conv_forward.3} parent=43 // pred_check
        %p988 = pneg %p987
      $region54: #{in_conv_forward.3} parent=43 // pred_check_branch
        %990 = sbr.rel (%p988) target = $region56
      $region55: #{in_conv_forward.3} parent=43 // pred_region
        %p991 = scmp.eq.s32.totalorder %s24, 0
        // Predicated region
        $region57: #{in_conv_forward.3} parent=55 // pred_check
          %p992 = pneg %p991
        $region58: #{in_conv_forward.3} parent=55 // pred_check_branch
          %994 = sbr.rel (%p992) target = $region60
        $region59: #{in_conv_forward.3} parent=55 // pred_region
          %v995 = vld [vmem:[#allocation2] sm:$0xff]
          %v996 = vmul.f32 %v995, 0.001953125
          %v997 = vld [vmem:[#allocation3] sm:$0xff]
          %v998 = vmul.f32 %v997, 0.001953125
          %v999 = vmul.f32 %v996, %v996
          %v1000 = vsub.f32 %v998, %v999
          %v1001 = vmax.f32 %v1000, 0.0
          %v1002 = vadd.f32 %v1001, 1e-05
          %v1003 = vrsqrt.pop %v1002
          %v1004 = vld [vmem:[%s341] sm:$0xff]
          %v1005 = vmul.f32 %v1004, %v1003
          %vm1006 = vcmask 7168
          %1007 = vst.msk [vmem:[#allocation4] sm:$0xff] %vm1006, %v1005
          %v1008 = vld [vmem:[%s345] sm:$0xff]
          %v1009 = vld [vmem:[%s341] sm:$0xff]
          %v1010 = vmul.f32 %v996, %v1009
          %v1011 = vmul.f32 %v1010, %v1003
          %v1012 = vsub.f32 %v1008, %v1011
          %1013 = vst.msk [vmem:[#allocation5] sm:$0xff] %vm1006, %v1012
        $region60: #{in_conv_forward.3} parent=55 // pred_fallthru
          _
        %v1014 = vld [vmem:[#allocation4] sm:$0xff]
        %1016 = vset.pattern.permute.xlu0 0
        %1017 = vperm.xlu0 %1016, %v1014
        %v1018 = vpop.permute.xlu0 %1017
        %v1020 = vmul.f32 %v959, %v1018
        %v1021 = vmul.f32 %v960, %v1018
        %v1022 = vld [vmem:[#allocation5] sm:$0xff]
        %1024 = vset.pattern.permute.xlu0 0
        %1025 = vperm.xlu0 %1024, %v1022
        %v1026 = vpop.permute.xlu0 %1025
        %v1028 = vadd.f32 %v1020, %v1026
        %v1029 = vadd.f32 %v1021, %v1026
        %v1030 = vmax.f32 %v1028, 0.0
        %v1031 = vmax.f32 %v1029, 0.0
        %v1032 = vpack.c.bf16 %v1030, %v1030
        %v1033 = vpack.c.bf16 %v1031, %v1031
        %1036 = vrot.lane.b32.xlu0 %v1032, 32
        %v1037 = vpop.permute.xlu0 %1036
        %1038 = vrot.lane.b32.xlu0 %v1033, 32
        %v1039 = vpop.permute.xlu0 %1038
        %vm1040 = vcmask 261120
        %v1041 = vsel %vm1040, %v1037, %v1039
        %vm1042 = vcmask 261120
        %v1045 = vsel %vm1042, 0, %v1037
        %v1047 = vsel %vm1042, %v1039, 0
        %v1050 = vunpack.c.l.b16 %v1045
        %v1051 = vunpack.c.l.b16 %v1041
        %v1052 = vunpack.c.l.b16 %v1047
        %v1053 = vpack.c.b16 %v1051, %v1050
        %v1054 = vpack.c.b16 %v1052, %v1052
        %1057 = vst [vmem:[%s355] sm:$0xff] %v1053
        %vm1058 = vcmask 519168
        %1059 = vst.msk [vmem:[%s355 + $0x8] sm:$0xf] %vm1058, %v1054
      $region56: #{in_conv_forward.3} parent=43 // pred_fallthru
        _
      %s1060 = smul.u32 %s24, %s23
      %p1061 = scmp.lt.s32.totalorder %s1060, 1
      %s1062 = scalar_select %p1061, %s1060, 1
      %p1063 = scmp.lt.s32.totalorder %s22, 0
      %s1064 = scalar_select %p1063, %s22, 0
      %s1065 = smul.addr %s1064, 3
      %s1066 = smul.addr %s1062, 3
      %s1067 = sadd.s32 %s1065, %s1066
      %s1068 = smul.addr %s1067, 4
      %s1069 = scalar_lea.vmem %s6, %s1068
      // Predicated region
      $region61: #{in_conv_forward.3} parent=43 // pred_check
        %p1070 = pneg %p209
      $region62: #{in_conv_forward.3} parent=43 // pred_check_branch
        %1072 = sbr.rel (%p1070) target = $region64
      $region63: #{in_conv_forward.3} parent=43 // pred_region
        %s1073 = smul.u32 %s24, %s23
      $region64: #{in_conv_forward.3} parent=43 // pred_fallthru
        _
    $region44: #{in_conv_forward.3} parent=5 // pred_fallthru
      _
    %p1074 = scmp.le.s32.totalorder 2, %s12
    // Predicated region
    $region65: #{in_conv_forward.3} parent=5 // pred_check
      %p1075 = pneg %p1074
    $region66: #{in_conv_forward.3} parent=5 // pred_check_branch
      %1077 = sbr.rel (%p1075) target = $region68
    $region67: #{in_conv_forward.3} parent=5 // pred_region
      %s1078 = ssub.s32 %s12, 2
      // Predicated region
      $region69: #{in_conv_forward.3} parent=67 // pred_check
        %p1079 = pneg %p215
      $region70: #{in_conv_forward.3} parent=67 // pred_check_branch
        %1081 = sbr.rel (%p1079) target = $region72
      $region71: #{in_conv_forward.3} parent=67 // pred_region
        %s1082 = smul.u32 %s27, %s26
        %p1083 = scmp.lt.s32.totalorder %s1082, 1
        %s1084 = scalar_select %p1083, %s1082, 1
        %p1085 = scmp.lt.s32.totalorder %s25, 0
        %s1086 = scalar_select %p1085, %s25, 0
        %s1087 = smul.addr %s1086, 3
        %s1088 = smul.addr %s1084, 3
        %s1089 = sadd.s32 %s1087, %s1088
        %s1090 = smul.addr %s1089, 4
        %s1091 = scalar_lea.vmem %s6, %s1090
      $region72: #{in_conv_forward.3} parent=67 // pred_fallthru
        _
    $region68: #{in_conv_forward.3} parent=5 // pred_fallthru
      _
  $region6: #{in_conv_forward.3} parent=0 // loop_footer
    %s16 = sadd.s32 1, %s12
  $region7: #{in_conv_forward.3} parent=0 // loop_footer_branch
    %11 = sbr.rel target = $region3
  $region8: #{in_conv_forward.3} parent=0 // loop_exit
    _

// kernel: in_conv_forward.2
$region0: #{in_conv_forward.2}
  #allocation0 [shape = 'u32[]', space=smem, size = 0x4, offset = 0x4, fixed_abs, tag = 'smem constant byte address 0x4 - core index']
  #allocation1 [shape = 'u32[144,128]{1,0:T(1,128)}', space=vmem, size = 0x12000, scoped, tag = 'internal scratch']
  #allocation2 [shape = 'f32[8,1]{1,0:T(8,128)}', space=vmem, size = 0x1000, scoped, tag = 'scratch operand']
  #allocation3 [shape = 'f32[8,1]{1,0:T(8,128)}', space=vmem, size = 0x1000, scoped, tag = 'scratch operand']
  #allocation4 [shape = 'f32[8,1]{1,0:T(8,128)}', space=vmem, size = 0x1000, scoped, tag = 'scratch operand']
  #allocation5 [shape = 'f32[8,1]{1,0:T(8,128)}', space=vmem, size = 0x1000, scoped, tag = 'scratch operand']
  %s0 = inlined_call_operand.vmem [shape: bf16[2,4,320], index: 0, kind: input, shape index: {}]
  %s1 = inlined_call_operand.vmem [shape: bf16[9,8,4], index: 1, kind: input, shape index: {}]
  %s2 = inlined_call_operand.vmem [shape: f32[8,256], index: 2, kind: input, shape index: {}]
  %s3 = inlined_call_operand.vmem [shape: f32[2,256], index: 3, kind: input, shape index: {}]
  %s4 = inlined_call_operand.vmem [shape: f32[8,1], index: 4, kind: input, shape index: {}]
  %s5 = inlined_call_operand.vmem [shape: f32[8,1], index: 5, kind: input, shape index: {}]
  %s6 = inlined_call_operand.vmem [shape: bf16[2,8,320], index: 6, kind: output, shape index: {}]
  %s7 = sld [smem:[#allocation0]]
  $region73: #{in_conv_forward.2} parent=0
    _
  %s9 = ssub.s32 1, %s7
  %s10 = scalar_select 0, %s9, %s7
  loop: start=0, step=1, limit=6
  $region2: #{in_conv_forward.2} parent=0 // loop_pre_header
    _
  $region3: #{in_conv_forward.2} parent=0 // loop_header
    %s12 = sphi 0, %s16
    %p13 = scmp.ge.s32.totalorder %s12, 6
    %s19 = sphi 0, %s38
    %s20 = sphi 0, %s34
    %s21 = sphi 0, %s30
    %s22 = sphi 0, %s19
    %s23 = sphi 0, %s20
    %s24 = sphi 0, %s21
    %s25 = sphi 0, %s22
    %s26 = sphi 0, %s23
    %s27 = sphi 0, %s24
    %s41 = sphi 0, %s43
    %s44 = sphi 0, %s41
    %s45 = sphi 0, %s44
    %s61 = sphi 0, %s45
    %s67 = sphi 0, %s69
    %s70 = sphi 0, %s67
    %s71 = sphi 0, %s70
    %s87 = sphi 0, %s71
    %s93 = sphi 0, %s95
    %s96 = sphi 0, %s93
    %s97 = sphi 0, %s96
    %s113 = sphi 0, %s97
    %s117 = sphi 0, %s117
    %s119 = sphi 0, %s117
    %s120 = sphi 0, %s119
    %s134 = sphi 0, %s120
    %s140 = sphi 0, %s142
    %s143 = sphi 0, %s140
    %s144 = sphi 0, %s143
    %s160 = sphi 0, %s144
    %s166 = sphi 0, %s168
    %s169 = sphi 0, %s166
    %s170 = sphi 0, %s169
    %s186 = sphi 0, %s170
    %s196 = sphi 0, %s198
    %s199 = sphi 0, %s196
    %s200 = sphi 0, %s199
    %s216 = sphi 0, %s200
  $region4: #{in_conv_forward.2} parent=0 // loop_header_branch
    %15 = sbr.rel (%p13) target = $region8
  $region5: #{in_conv_forward.2} parent=0 // loop_body
    %s17 = ssub.s32 %s12, 1
    %s18 = ssub.s32 %s12, 2
    %s28 = sadd.s32 1, %s21
    %p29 = scmp.ge.s32.totalorder %s28, 2
    %s30 = scalar_select %p29, 0, %s28
    %s31 = sadd.s32 1, %s20
    %s32 = scalar_select %p29, %s31, %s20
    %p33 = scmp.ge.s32.totalorder %s32, 2
    %s34 = scalar_select %p33, 0, %s32
    %s35 = sadd.s32 1, %s19
    %s36 = scalar_select %p33, %s35, %s19
    %p37 = scmp.ge.s32.totalorder %s36, 1
    %s38 = scalar_select %p37, 0, %s36
    %s39 = ssub.s32 %s21, %s30
    %p40 = scmp.eq.s32.totalorder %s39, 0
    %s42 = sadd.s32 %s41, 1
    %s43 = scalar_select %p40, %s41, %s42
    %p46 = pneg %p40
    %p47 = scmp.eq.s32.totalorder %s12, 3
    %p48 = por %p46, %p47
    %p49 = scmp.ne.s32.totalorder %s41, %s44
    %p50 = scmp.eq.s32.totalorder %s12, 0
    %p51 = por %p49, %p50
    %p52 = scmp.ne.s32.totalorder %s41, %s44
    %p53 = scmp.eq.s32.totalorder %s17, 3
    %p54 = por %p52, %p53
    %p55 = scmp.ne.s32.totalorder %s44, %s45
    %p56 = scmp.eq.s32.totalorder %s17, 0
    %p57 = por %p55, %p56
    %p58 = scmp.ne.s32.totalorder %s44, %s45
    %p59 = scmp.eq.s32.totalorder %s18, 3
    %p60 = por %p58, %p59
    %p62 = scmp.ne.s32.totalorder %s45, %s61
    %p63 = scmp.eq.s32.totalorder %s18, 0
    %p64 = por %p62, %p63
    %s65 = ssub.s32 %s19, %s38
    %p66 = scmp.eq.s32.totalorder %s65, 0
    %s68 = sadd.s32 %s67, 1
    %s69 = scalar_select %p66, %s67, %s68
    %p72 = pneg %p66
    %p73 = scmp.eq.s32.totalorder %s12, 3
    %p74 = por %p72, %p73
    %p75 = scmp.ne.s32.totalorder %s67, %s70
    %p76 = scmp.eq.s32.totalorder %s12, 0
    %p77 = por %p75, %p76
    %p78 = scmp.ne.s32.totalorder %s67, %s70
    %p79 = scmp.eq.s32.totalorder %s17, 3
    %p80 = por %p78, %p79
    %p81 = scmp.ne.s32.totalorder %s70, %s71
    %p82 = scmp.eq.s32.totalorder %s17, 0
    %p83 = por %p81, %p82
    %p84 = scmp.ne.s32.totalorder %s70, %s71
    %p85 = scmp.eq.s32.totalorder %s18, 3
    %p86 = por %p84, %p85
    %p88 = scmp.ne.s32.totalorder %s71, %s87
    %p89 = scmp.eq.s32.totalorder %s18, 0
    %p90 = por %p88, %p89
    %s91 = ssub.s32 %s19, %s38
    %p92 = scmp.eq.s32.totalorder %s91, 0
    %s94 = sadd.s32 %s93, 1
    %s95 = scalar_select %p92, %s93, %s94
    %p98 = pneg %p92
    %p99 = scmp.eq.s32.totalorder %s12, 3
    %p100 = por %p98, %p99
    %p101 = scmp.ne.s32.totalorder %s93, %s96
    %p102 = scmp.eq.s32.totalorder %s12, 0
    %p103 = por %p101, %p102
    %p104 = scmp.ne.s32.totalorder %s93, %s96
    %p105 = scmp.eq.s32.totalorder %s17, 3
    %p106 = por %p104, %p105
    %p107 = scmp.ne.s32.totalorder %s96, %s97
    %p108 = scmp.eq.s32.totalorder %s17, 0
    %p109 = por %p107, %p108
    %p110 = scmp.ne.s32.totalorder %s96, %s97
    %p111 = scmp.eq.s32.totalorder %s18, 3
    %p112 = por %p110, %p111
    %p114 = scmp.ne.s32.totalorder %s97, %s113
    %p115 = scmp.eq.s32.totalorder %s18, 0
    %p116 = por %p114, %p115
    %s118 = sadd.s32 %s117, 1
    %p121 = scmp.eq.s32.totalorder %s12, 3
    %p122 = scmp.ne.s32.totalorder %s117, %s119
    %p123 = scmp.eq.s32.totalorder %s12, 0
    %p124 = por %p122, %p123
    %p125 = scmp.ne.s32.totalorder %s117, %s119
    %p126 = scmp.eq.s32.totalorder %s17, 3
    %p127 = por %p125, %p126
    %p128 = scmp.ne.s32.totalorder %s119, %s120
    %p129 = scmp.eq.s32.totalorder %s17, 0
    %p130 = por %p128, %p129
    %p131 = scmp.ne.s32.totalorder %s119, %s120
    %p132 = scmp.eq.s32.totalorder %s18, 3
    %p133 = por %p131, %p132
    %p135 = scmp.ne.s32.totalorder %s120, %s134
    %p136 = scmp.eq.s32.totalorder %s18, 0
    %p137 = por %p135, %p136
    %s138 = ssub.s32 %s19, %s38
    %p139 = scmp.eq.s32.totalorder %s138, 0
    %s141 = sadd.s32 %s140, 1
    %s142 = scalar_select %p139, %s140, %s141
    %p145 = pneg %p139
    %p146 = scmp.eq.s32.totalorder %s12, 3
    %p147 = por %p145, %p146
    %p148 = scmp.ne.s32.totalorder %s140, %s143
    %p149 = scmp.eq.s32.totalorder %s12, 0
    %p150 = por %p148, %p149
    %p151 = scmp.ne.s32.totalorder %s140, %s143
    %p152 = scmp.eq.s32.totalorder %s17, 3
    %p153 = por %p151, %p152
    %p154 = scmp.ne.s32.totalorder %s143, %s144
    %p155 = scmp.eq.s32.totalorder %s17, 0
    %p156 = por %p154, %p155
    %p157 = scmp.ne.s32.totalorder %s143, %s144
    %p158 = scmp.eq.s32.totalorder %s18, 3
    %p159 = por %p157, %p158
    %p161 = scmp.ne.s32.totalorder %s144, %s160
    %p162 = scmp.eq.s32.totalorder %s18, 0
    %p163 = por %p161, %p162
    %s164 = ssub.s32 %s19, %s38
    %p165 = scmp.eq.s32.totalorder %s164, 0
    %s167 = sadd.s32 %s166, 1
    %s168 = scalar_select %p165, %s166, %s167
    %p171 = pneg %p165
    %p172 = scmp.eq.s32.totalorder %s12, 3
    %p173 = por %p171, %p172
    %p174 = scmp.ne.s32.totalorder %s166, %s169
    %p175 = scmp.eq.s32.totalorder %s12, 0
    %p176 = por %p174, %p175
    %p177 = scmp.ne.s32.totalorder %s166, %s169
    %p178 = scmp.eq.s32.totalorder %s17, 3
    %p179 = por %p177, %p178
    %p180 = scmp.ne.s32.totalorder %s169, %s170
    %p181 = scmp.eq.s32.totalorder %s17, 0
    %p182 = por %p180, %p181
    %p183 = scmp.ne.s32.totalorder %s169, %s170
    %p184 = scmp.eq.s32.totalorder %s18, 3
    %p185 = por %p183, %p184
    %p187 = scmp.ne.s32.totalorder %s170, %s186
    %p188 = scmp.eq.s32.totalorder %s18, 0
    %p189 = por %p187, %p188
    %s190 = smul.u32 %s21, %s20
    %s191 = smul.u32 %s30, %s34
    %s192 = ssub.s32 %s190, %s191
    %s193 = ssub.s32 %s19, %s38
    %s194 = sor.u32 %s192, %s193
    %p195 = scmp.eq.s32.totalorder %s194, 0
    %s197 = sadd.s32 %s196, 1
    %s198 = scalar_select %p195, %s196, %s197
    %p201 = pneg %p195
    %p202 = scmp.eq.s32.totalorder %s12, 3
    %p203 = por %p201, %p202
    %p204 = scmp.ne.s32.totalorder %s196, %s199
    %p205 = scmp.eq.s32.totalorder %s12, 0
    %p206 = por %p204, %p205
    %p207 = scmp.ne.s32.totalorder %s196, %s199
    %p208 = scmp.eq.s32.totalorder %s17, 3
    %p209 = por %p207, %p208
    %p210 = scmp.ne.s32.totalorder %s199, %s200
    %p211 = scmp.eq.s32.totalorder %s17, 0
    %p212 = por %p210, %p211
    %p213 = scmp.ne.s32.totalorder %s199, %s200
    %p214 = scmp.eq.s32.totalorder %s18, 3
    %p215 = por %p213, %p214
    %p217 = scmp.ne.s32.totalorder %s200, %s216
    %p218 = scmp.eq.s32.totalorder %s18, 0
    %p219 = por %p217, %p218
    %p220 = scmp.le.s32.totalorder 1, %s12
    %p221 = scmp.lt.s32.totalorder %s12, 5
    %p222 = pnand %p220, %p221
    %p223 = pneg %p222
    // Predicated region
    $region9: #{in_conv_forward.2} parent=5 // pred_check
      _
    $region10: #{in_conv_forward.2} parent=5 // pred_check_branch
      %225 = sbr.rel (%p222) target = $region12
    $region11: #{in_conv_forward.2} parent=5 // pred_region
      %s226 = ssub.s32 %s12, 1
      // Predicated region
      $region13: #{in_conv_forward.2} parent=11 // pred_check
        %p227 = pneg %p83
      $region14: #{in_conv_forward.2} parent=11 // pred_check_branch
        %229 = sbr.rel (%p227) target = $region16
      $region15: #{in_conv_forward.2} parent=11 // pred_region
        %p230 = scmp.lt.s32.totalorder %s22, 0
        %s231 = scalar_select %p230, %s22, 0
        %s232 = smul.addr %s231, 4
        %s233 = scalar_lea.vmem %s1, %s232
      $region16: #{in_conv_forward.2} parent=11 // pred_fallthru
        _
      // Predicated region
      $region17: #{in_conv_forward.2} parent=11 // pred_check
        %p234 = pneg %p109
      $region18: #{in_conv_forward.2} parent=11 // pred_check_branch
        %236 = sbr.rel (%p234) target = $region20
      $region19: #{in_conv_forward.2} parent=11 // pred_region
        %p237 = scmp.lt.s32.totalorder %s22, 0
        %s238 = scalar_select %p237, %s22, 0
        %s239 = smul.addr %s238, 2
        %s240 = smul.addr %s239, 8
        %s241 = scalar_lea.vmem %s2, %s240
      $region20: #{in_conv_forward.2} parent=11 // pred_fallthru
        _
      // Predicated region
      $region21: #{in_conv_forward.2} parent=11 // pred_check
        %p242 = pneg %p130
      $region22: #{in_conv_forward.2} parent=11 // pred_check_branch
        %244 = sbr.rel (%p242) target = $region24
      $region23: #{in_conv_forward.2} parent=11 // pred_region
        _
      $region24: #{in_conv_forward.2} parent=11 // pred_fallthru
        _
      // Predicated region
      $region25: #{in_conv_forward.2} parent=11 // pred_check
        %p245 = pneg %p156
      $region26: #{in_conv_forward.2} parent=11 // pred_check_branch
        %247 = sbr.rel (%p245) target = $region28
      $region27: #{in_conv_forward.2} parent=11 // pred_region
        %p248 = scmp.lt.s32.totalorder %s22, 0
        %s249 = scalar_select %p248, %s22, 0
        %s250 = smul.addr %s249, 8
        %s251 = scalar_lea.vmem %s4, %s250
      $region28: #{in_conv_forward.2} parent=11 // pred_fallthru
        _
      // Predicated region
      $region29: #{in_conv_forward.2} parent=11 // pred_check
        %p252 = pneg %p182
      $region30: #{in_conv_forward.2} parent=11 // pred_check_branch
        %254 = sbr.rel (%p252) target = $region32
      $region31: #{in_conv_forward.2} parent=11 // pred_region
        %p255 = scmp.lt.s32.totalorder %s22, 0
        %s256 = scalar_select %p255, %s22, 0
        %s257 = smul.addr %s256, 8
        %s258 = scalar_lea.vmem %s5, %s257
      $region32: #{in_conv_forward.2} parent=11 // pred_fallthru
        _
    $region12: #{in_conv_forward.2} parent=5 // pred_fallthru
      _
    %p259 = scmp.lt.s32.totalorder %s12, 4
    // Predicated region
    $region33: #{in_conv_forward.2} parent=5 // pred_check
      %p260 = pneg %p259
    $region34: #{in_conv_forward.2} parent=5 // pred_check_branch
      %262 = sbr.rel (%p260) target = $region36
    $region35: #{in_conv_forward.2} parent=5 // pred_region
      // Predicated region
      $region37: #{in_conv_forward.2} parent=35 // pred_check
        %p263 = pneg %p51
      $region38: #{in_conv_forward.2} parent=35 // pred_check_branch
        %265 = sbr.rel (%p263) target = $region40
      $region39: #{in_conv_forward.2} parent=35 // pred_region
        %p266 = scmp.lt.s32.totalorder %s21, 1
        %s267 = scalar_select %p266, %s21, 1
        %s268 = smul.addr %s267, 3
        %s269 = smul.addr %s268, 2
        %s270 = scalar_lea.vmem %s0, %s269
      $region40: #{in_conv_forward.2} parent=35 // pred_fallthru
        _
    $region36: #{in_conv_forward.2} parent=5 // pred_fallthru
      _
    %p271 = scmp.le.s32.totalorder 1, %s12
    %p272 = scmp.lt.s32.totalorder %s12, 5
    %p273 = pnand %p271, %p272
    %p274 = pneg %p273
    // Predicated region
    $region41: #{in_conv_forward.2} parent=5 // pred_check
      _
    $region42: #{in_conv_forward.2} parent=5 // pred_check_branch
      %276 = sbr.rel (%p273) target = $region44
    $region43: #{in_conv_forward.2} parent=5 // pred_region
      %s277 = ssub.s32 %s12, 1
      %p278 = scmp.lt.s32.totalorder %s24, 1
      %s279 = scalar_select %p278, %s24, 1
      %s280 = smul.addr %s279, 3
      %s281 = smul.addr %s280, 2
      %s282 = scalar_lea.vmem %s0, %s281
      %p283 = pneg %p57
      %p284 = pneg %p54
      %p285 = scmp.lt.s32.totalorder %s22, 0
      %s286 = scalar_select %p285, %s22, 0
      %s287 = smul.addr %s286, 4
      %s288 = scalar_lea.vmem %s1, %s287
      %p289 = pneg %p83
      %p290 = pneg %p80
      %p291 = scmp.lt.s32.totalorder %s22, 0
      %s292 = scalar_select %p291, %s22, 0
      %s293 = smul.addr %s292, 2
      %s294 = smul.addr %s293, 8
      %s295 = scalar_lea.vmem %s2, %s294
      %p296 = pneg %p109
      %p297 = pneg %p106
      %p298 = pneg %p130
      %p299 = pneg %p127
      %p300 = scmp.lt.s32.totalorder %s22, 0
      %s301 = scalar_select %p300, %s22, 0
      %s302 = smul.addr %s301, 8
      %s303 = scalar_lea.vmem %s4, %s302
      %p304 = pneg %p156
      %p305 = pneg %p153
      %p306 = scmp.lt.s32.totalorder %s22, 0
      %s307 = scalar_select %p306, %s22, 0
      %s308 = smul.addr %s307, 8
      %s309 = scalar_lea.vmem %s5, %s308
      %p310 = pneg %p182
      %p311 = pneg %p179
      %p312 = pneg %p212
      %p313 = pneg %p209
      %s314 = smul.u32 %s24, %s23
      %p315 = scmp.lt.s32.totalorder %s314, 1
      %s316 = scalar_select %p315, %s314, 1
      %p317 = scmp.lt.s32.totalorder %s22, 0
      %s318 = scalar_select %p317, %s22, 0
      %s319 = smul.addr %s318, 3
      %s320 = smul.addr %s316, 3
      %s321 = sadd.s32 %s319, %s320
      %s322 = smul.addr %s321, 4
      %s323 = scalar_lea.vmem %s6, %s322
      %p324 = scmp.lt.s32.totalorder %s24, 1
      %s325 = scalar_select %p324, %s24, 1
      %s326 = smul.addr %s325, 3
      %s327 = smul.addr %s326, 2
      %s328 = scalar_lea.vmem %s0, %s327
      %p329 = scmp.lt.s32.totalorder %s22, 0
      %s330 = scalar_select %p329, %s22, 0
      %s331 = smul.addr %s330, 4
      %s332 = scalar_lea.vmem %s1, %s331
      %p333 = scmp.lt.s32.totalorder %s22, 0
      %s334 = scalar_select %p333, %s22, 0
      %s335 = smul.addr %s334, 2
      %s336 = smul.addr %s335, 8
      %s337 = scalar_lea.vmem %s2, %s336
      %p338 = scmp.lt.s32.totalorder %s22, 0
      %s339 = scalar_select %p338, %s22, 0
      %s340 = smul.addr %s339, 8
      %s341 = scalar_lea.vmem %s4, %s340
      %p342 = scmp.lt.s32.totalorder %s22, 0
      %s343 = scalar_select %p342, %s22, 0
      %s344 = smul.addr %s343, 8
      %s345 = scalar_lea.vmem %s5, %s344
      %s346 = smul.u32 %s24, %s23
      %p347 = scmp.lt.s32.totalorder %s346, 1
      %s348 = scalar_select %p347, %s346, 1
      %p349 = scmp.lt.s32.totalorder %s22, 0
      %s350 = scalar_select %p349, %s22, 0
      %s351 = smul.addr %s350, 3
      %s352 = smul.addr %s348, 3
      %s353 = sadd.s32 %s351, %s352
      %s354 = smul.addr %s353, 4
      %s355 = scalar_lea.vmem %s6, %s354
      %s356 = smul.u32 %s24, %s23
      %v358 = vld [vmem:[%s337] sm:$0xff]
      %v359 = vld [vmem:[%s337 + $0x8] sm:$0xff]
      %v360 = vld [vmem:[%s328] sm:$0x3f]
      %v361 = vld [vmem:[%s332] sm:$0xf]
      %s362 = scalar_lea.vmem %s332, 12
      %v363 = vld [vmem:[%s362] sm:$0xf]
      %v365 = vcombine.high %v360, %v360
      %v367 = vunpack.c.l.s4 1983009808
      %v368 = vunpack.c.0.s8 %v367
      %v369 = vlaneseq
      %v370 = vshrl.u32 %v369, 7
      %v371 = vsub.s32 %v368, %v370
      %v372 = vrot.slane %v360, %v371
      %v374 = vunpack.c.l.s4 1983009808
      %v375 = vunpack.c.0.s8 %v374
      %v376 = vlaneseq
      %v377 = vshrl.u32 %v376, 7
      %v378 = vsub.s32 %v375, %v377
      %v379 = vrot.slane %v365, %v378
      %v380 = vcombine.high %v372, %v372
      %381 = vrot.lane.b32.xlu0 %v372, 97
      %v382 = vpop.permute.xlu0 %381
      %383 = vrot.lane.b32.xlu0 %v380, 97
      %v384 = vpop.permute.xlu0 %383
      %385 = vrot.lane.b32.xlu0 %v379, 97
      %v386 = vpop.permute.xlu0 %385
      %vm387 = vcmask 793600
      %v388 = vsel %vm387, %v382, %v384
      %v389 = vsel %vm387, %v384, %v386
      %vm390 = vcmask 31744
      %v392 = vsel %vm390, %v363, 0
      %vm394 = vcmask 1041408
      %v396 = vsel %vm394, %v388, 0
      %v399 = vsel %vm394, %v389, 0
      %401 = vmatprep.subr.bf16.mxu0 0
      %402 = vmatpush1.bf16.msra.mxu0 0
      %403 = vmatprep.subr.bf16.mxu0 0
      %404 = vmatpush1.bf16.msra.mxu0 0
      %405 = vmatprep.subr.bf16.mxu0 0
      %406 = vmatpush1.bf16.msra.mxu0 0
      %407 = vmatprep.subr.bf16.mxu0 0
      %408 = vmatpush1.bf16.msra.mxu0 0
      %409 = vmatprep.subr.bf16.mxu0 0
      %410 = vmatpush1.bf16.msra.mxu0 0
      %411 = vmatprep.subr.bf16.mxu0 0
      %412 = vmatpush1.bf16.msra.mxu0 0
      %413 = vmatprep.subr.bf16.mxu0 0
      %414 = vmatpush1.bf16.msra.mxu0 0
      %415 = vmatprep.subr.bf16.mxu0 %v399
      %416 = vmatpush1.bf16.msra.mxu0 %v396
      %417 = vmatprep.subr.bf16.mxu0 0
      %418 = vmatpush2.bf16.msra.mxu0 0
      %419 = vmatprep.subr.bf16.mxu0 0
      %420 = vmatpush2.bf16.msra.mxu0 0
      %421 = vmatprep.subr.bf16.mxu0 0
      %422 = vmatpush2.bf16.msra.mxu0 0
      %423 = vmatprep.subr.bf16.mxu0 0
      %424 = vmatpush2.bf16.msra.mxu0 0
      %425 = vmatprep.subr.bf16.mxu0 0
      %426 = vmatpush2.bf16.msra.mxu0 0
      %427 = vmatprep.subr.bf16.mxu0 0
      %428 = vmatpush2.bf16.msra.mxu0 0
      %429 = vmatprep.subr.bf16.mxu0 0
      %430 = vmatpush2.bf16.msra.mxu0 0
      %431 = vmatprep.subr.bf16.mxu0 0
      %432 = vmatpush2.bf16.msra.mxu0 0
      %433 = vmatprep.mubr.bf16.mxu0 0
      %434 = vmatmul.mubr.bf16.gmra.mxu0 %v392
      %v435 = vpop.f32.mrf.mxu0
      %v436 = vadd.f32 0.0, %v435
      %v437 = vpop.f32.mrf.mxu0
      %v438 = vadd.f32 0.0, %v437
      %v439 = vpop.f32.mrf.mxu0
      %v440 = vpop.f32.mrf.mxu0
      %441 = vdwg.mxu0
      %442 = vrot.lane.b32.xlu0 %v372, 113
      %v443 = vpop.permute.xlu0 %442
      %444 = vrot.lane.b32.xlu0 %v380, 113
      %v445 = vpop.permute.xlu0 %444
      %446 = vrot.lane.b32.xlu0 %v379, 113
      %v447 = vpop.permute.xlu0 %446
      %vm448 = vcmask 924672
      %v449 = vsel %vm448, %v443, %v445
      %v450 = vsel %vm448, %v445, %v447
      %v452 = vsel %vm390, %v361, 0
      %v455 = vsel %vm394, %v449, 0
      %v458 = vsel %vm394, %v450, 0
      %460 = vmatprep.subr.bf16.mxu0 0
      %461 = vmatpush1.bf16.msra.mxu0 0
      %462 = vmatprep.subr.bf16.mxu0 0
      %463 = vmatpush1.bf16.msra.mxu0 0
      %464 = vmatprep.subr.bf16.mxu0 0
      %465 = vmatpush1.bf16.msra.mxu0 0
      %466 = vmatprep.subr.bf16.mxu0 0
      %467 = vmatpush1.bf16.msra.mxu0 0
      %468 = vmatprep.subr.bf16.mxu0 0
      %469 = vmatpush1.bf16.msra.mxu0 0
      %470 = vmatprep.subr.bf16.mxu0 0
      %471 = vmatpush1.bf16.msra.mxu0 0
      %472 = vmatprep.subr.bf16.mxu0 0
      %473 = vmatpush1.bf16.msra.mxu0 0
      %474 = vmatprep.subr.bf16.mxu0 %v458
      %475 = vmatpush1.bf16.msra.mxu0 %v455
      %476 = vmatprep.subr.bf16.mxu0 0
      %477 = vmatpush2.bf16.msra.mxu0 0
      %478 = vmatprep.subr.bf16.mxu0 0
      %479 = vmatpush2.bf16.msra.mxu0 0
      %480 = vmatprep.subr.bf16.mxu0 0
      %481 = vmatpush2.bf16.msra.mxu0 0
      %482 = vmatprep.subr.bf16.mxu0 0
      %483 = vmatpush2.bf16.msra.mxu0 0
      %484 = vmatprep.subr.bf16.mxu0 0
      %485 = vmatpush2.bf16.msra.mxu0 0
      %486 = vmatprep.subr.bf16.mxu0 0
      %487 = vmatpush2.bf16.msra.mxu0 0
      %488 = vmatprep.subr.bf16.mxu0 0
      %489 = vmatpush2.bf16.msra.mxu0 0
      %490 = vmatprep.subr.bf16.mxu0 0
      %491 = vmatpush2.bf16.msra.mxu0 0
      %492 = vmatprep.mubr.bf16.mxu0 0
      %493 = vmatmul.mubr.bf16.gmra.mxu0 %v452
      %v494 = vpop.f32.mrf.mxu0
      %v495 = vadd.f32 %v436, %v494
      %v496 = vpop.f32.mrf.mxu0
      %v497 = vadd.f32 %v438, %v496
      %v498 = vpop.f32.mrf.mxu0
      %v499 = vpop.f32.mrf.mxu0
      %500 = vdwg.mxu0
      %v501 = vld [vmem:[%s328] sm:$0x3f]
      %s502 = scalar_lea.vmem %s332, 24
      %v503 = vld [vmem:[%s502] sm:$0xf]
      %v505 = vcombine.high %v501, %v501
      %v507 = vunpack.c.l.s4 1983009808
      %v508 = vunpack.c.0.s8 %v507
      %v509 = vlaneseq
      %v510 = vshrl.u32 %v509, 7
      %v511 = vsub.s32 %v508, %v510
      %v512 = vrot.slane %v501, %v511
      %v514 = vunpack.c.l.s4 1983009808
      %v515 = vunpack.c.0.s8 %v514
      %v516 = vlaneseq
      %v517 = vshrl.u32 %v516, 7
      %v518 = vsub.s32 %v515, %v517
      %v519 = vrot.slane %v505, %v518
      %v520 = vcombine.high %v512, %v512
      %521 = vrot.lane.b32.xlu0 %v512, 81
      %v522 = vpop.permute.xlu0 %521
      %523 = vrot.lane.b32.xlu0 %v520, 81
      %v524 = vpop.permute.xlu0 %523
      %525 = vrot.lane.b32.xlu0 %v519, 81
      %v526 = vpop.permute.xlu0 %525
      %vm527 = vcmask 662528
      %v528 = vsel %vm527, %v522, %v524
      %v529 = vsel %vm527, %v524, %v526
      %v531 = vsel %vm390, %v503, 0
      %v534 = vsel %vm394, %v528, 0
      %v537 = vsel %vm394, %v529, 0
      %539 = vmatprep.subr.bf16.mxu0 0
      %540 = vmatpush1.bf16.msra.mxu0 0
      %541 = vmatprep.subr.bf16.mxu0 0
      %542 = vmatpush1.bf16.msra.mxu0 0
      %543 = vmatprep.subr.bf16.mxu0 0
      %544 = vmatpush1.bf16.msra.mxu0 0
      %545 = vmatprep.subr.bf16.mxu0 0
      %546 = vmatpush1.bf16.msra.mxu0 0
      %547 = vmatprep.subr.bf16.mxu0 0
      %548 = vmatpush1.bf16.msra.mxu0 0
      %549 = vmatprep.subr.bf16.mxu0 0
      %550 = vmatpush1.bf16.msra.mxu0 0
      %551 = vmatprep.subr.bf16.mxu0 0
      %552 = vmatpush1.bf16.msra.mxu0 0
      %553 = vmatprep.subr.bf16.mxu0 %v537
      %554 = vmatpush1.bf16.msra.mxu0 %v534
      %555 = vmatprep.subr.bf16.mxu0 0
      %556 = vmatpush2.bf16.msra.mxu0 0
      %557 = vmatprep.subr.bf16.mxu0 0
      %558 = vmatpush2.bf16.msra.mxu0 0
      %559 = vmatprep.subr.bf16.mxu0 0
      %560 = vmatpush2.bf16.msra.mxu0 0
      %561 = vmatprep.subr.bf16.mxu0 0
      %562 = vmatpush2.bf16.msra.mxu0 0
      %563 = vmatprep.subr.bf16.mxu0 0
      %564 = vmatpush2.bf16.msra.mxu0 0
      %565 = vmatprep.subr.bf16.mxu0 0
      %566 = vmatpush2.bf16.msra.mxu0 0
      %567 = vmatprep.subr.bf16.mxu0 0
      %568 = vmatpush2.bf16.msra.mxu0 0
      %569 = vmatprep.subr.bf16.mxu0 0
      %570 = vmatpush2.bf16.msra.mxu0 0
      %571 = vmatprep.mubr.bf16.mxu0 0
      %572 = vmatmul.mubr.bf16.gmra.mxu0 %v531
      %v573 = vpop.f32.mrf.mxu0
      %v574 = vadd.f32 0.0, %v573
      %v575 = vpop.f32.mrf.mxu0
      %v576 = vadd.f32 0.0, %v575
      %v577 = vpop.f32.mrf.mxu0
      %v578 = vpop.f32.mrf.mxu0
      %579 = vdwg.mxu0
      %v580 = vadd.f32 %v495, %v574
      %v581 = vadd.f32 %v497, %v576
      %v582 = vld [vmem:[%s3] ss:$2 sm:$0x3]
      %v584 = vlaneseq
      %v585 = vshrl.u32 %v584, 7
      %v586 = vsub.s32 0, %v585
      %v587 = vrot.slane %v582, %v586
      %v588 = vlaneseq
      %v589 = vshrl.u32 %v588, 7
      %v590 = vsub.s32 1, %v589
      %v591 = vrot.slane %v582, %v590
      %v594 = vmul.f32 %v580, %v587
      %v595 = vmul.f32 %v581, %v591
      %v596 = vadd.f32 %v358, %v594
      %v597 = vadd.f32 %v359, %v595
      %v598 = vld [vmem:[%s328] sm:$0x3f]
      %s599 = scalar_lea.vmem %s332, 4
      %v600 = vld [vmem:[%s599] sm:$0xf]
      %s601 = scalar_lea.vmem %s332, 16
      %v602 = vld [vmem:[%s601] sm:$0xf]
      %v604 = vcombine.high %v598, %v598
      %v606 = vunpack.c.l.s4 1983009808
      %v607 = vunpack.c.0.s8 %v606
      %v608 = vlaneseq
      %v609 = vshrl.u32 %v608, 7
      %v610 = vsub.s32 %v607, %v609
      %v611 = vrot.slane %v598, %v610
      %v613 = vunpack.c.l.s4 1983009808
      %v614 = vunpack.c.0.s8 %v613
      %v615 = vlaneseq
      %v616 = vshrl.u32 %v615, 7
      %v617 = vsub.s32 %v614, %v616
      %v618 = vrot.slane %v604, %v617
      %v619 = vcombine.high %v611, %v611
      %620 = vrot.lane.b32.xlu0 %v611, 96
      %v621 = vpop.permute.xlu0 %620
      %622 = vrot.lane.b32.xlu0 %v619, 96
      %v623 = vpop.permute.xlu0 %622
      %624 = vrot.lane.b32.xlu0 %v618, 96
      %v625 = vpop.permute.xlu0 %624
      %vm626 = vcmask 785408
      %v627 = vsel %vm626, %v621, %v623
      %v628 = vsel %vm626, %v623, %v625
      %v630 = vsel %vm390, %v602, 0
      %v633 = vsel %vm394, %v627, 0
      %v636 = vsel %vm394, %v628, 0
      %638 = vmatprep.subr.bf16.mxu0 0
      %639 = vmatpush1.bf16.msra.mxu0 0
      %640 = vmatprep.subr.bf16.mxu0 0
      %641 = vmatpush1.bf16.msra.mxu0 0
      %642 = vmatprep.subr.bf16.mxu0 0
      %643 = vmatpush1.bf16.msra.mxu0 0
      %644 = vmatprep.subr.bf16.mxu0 0
      %645 = vmatpush1.bf16.msra.mxu0 0
      %646 = vmatprep.subr.bf16.mxu0 0
      %647 = vmatpush1.bf16.msra.mxu0 0
      %648 = vmatprep.subr.bf16.mxu0 0
      %649 = vmatpush1.bf16.msra.mxu0 0
      %650 = vmatprep.subr.bf16.mxu0 0
      %651 = vmatpush1.bf16.msra.mxu0 0
      %652 = vmatprep.subr.bf16.mxu0 %v636
      %653 = vmatpush1.bf16.msra.mxu0 %v633
      %654 = vmatprep.subr.bf16.mxu0 0
      %655 = vmatpush2.bf16.msra.mxu0 0
      %656 = vmatprep.subr.bf16.mxu0 0
      %657 = vmatpush2.bf16.msra.mxu0 0
      %658 = vmatprep.subr.bf16.mxu0 0
      %659 = vmatpush2.bf16.msra.mxu0 0
      %660 = vmatprep.subr.bf16.mxu0 0
      %661 = vmatpush2.bf16.msra.mxu0 0
      %662 = vmatprep.subr.bf16.mxu0 0
      %663 = vmatpush2.bf16.msra.mxu0 0
      %664 = vmatprep.subr.bf16.mxu0 0
      %665 = vmatpush2.bf16.msra.mxu0 0
      %666 = vmatprep.subr.bf16.mxu0 0
      %667 = vmatpush2.bf16.msra.mxu0 0
      %668 = vmatprep.subr.bf16.mxu0 0
      %669 = vmatpush2.bf16.msra.mxu0 0
      %670 = vmatprep.mubr.bf16.mxu0 0
      %671 = vmatmul.mubr.bf16.gmra.mxu0 %v630
      %v672 = vpop.f32.mrf.mxu0
      %v673 = vadd.f32 0.0, %v672
      %v674 = vpop.f32.mrf.mxu0
      %v675 = vadd.f32 0.0, %v674
      %v676 = vpop.f32.mrf.mxu0
      %v677 = vpop.f32.mrf.mxu0
      %678 = vdwg.mxu0
      %679 = vrot.lane.b32.xlu0 %v611, 112
      %v680 = vpop.permute.xlu0 %679
      %681 = vrot.lane.b32.xlu0 %v619, 112
      %v682 = vpop.permute.xlu0 %681
      %683 = vrot.lane.b32.xlu0 %v618, 112
      %v684 = vpop.permute.xlu0 %683
      %vm685 = vcmask 916480
      %v686 = vsel %vm685, %v680, %v682
      %v687 = vsel %vm685, %v682, %v684
      %v689 = vsel %vm390, %v600, 0
      %v692 = vsel %vm394, %v686, 0
      %v695 = vsel %vm394, %v687, 0
      %697 = vmatprep.subr.bf16.mxu0 0
      %698 = vmatpush1.bf16.msra.mxu0 0
      %699 = vmatprep.subr.bf16.mxu0 0
      %700 = vmatpush1.bf16.msra.mxu0 0
      %701 = vmatprep.subr.bf16.mxu0 0
      %702 = vmatpush1.bf16.msra.mxu0 0
      %703 = vmatprep.subr.bf16.mxu0 0
      %704 = vmatpush1.bf16.msra.mxu0 0
      %705 = vmatprep.subr.bf16.mxu0 0
      %706 = vmatpush1.bf16.msra.mxu0 0
      %707 = vmatprep.subr.bf16.mxu0 0
      %708 = vmatpush1.bf16.msra.mxu0 0
      %709 = vmatprep.subr.bf16.mxu0 0
      %710 = vmatpush1.bf16.msra.mxu0 0
      %711 = vmatprep.subr.bf16.mxu0 %v695
      %712 = vmatpush1.bf16.msra.mxu0 %v692
      %713 = vmatprep.subr.bf16.mxu0 0
      %714 = vmatpush2.bf16.msra.mxu0 0
      %715 = vmatprep.subr.bf16.mxu0 0
      %716 = vmatpush2.bf16.msra.mxu0 0
      %717 = vmatprep.subr.bf16.mxu0 0
      %718 = vmatpush2.bf16.msra.mxu0 0
      %719 = vmatprep.subr.bf16.mxu0 0
      %720 = vmatpush2.bf16.msra.mxu0 0
      %721 = vmatprep.subr.bf16.mxu0 0
      %722 = vmatpush2.bf16.msra.mxu0 0
      %723 = vmatprep.subr.bf16.mxu0 0
      %724 = vmatpush2.bf16.msra.mxu0 0
      %725 = vmatprep.subr.bf16.mxu0 0
      %726 = vmatpush2.bf16.msra.mxu0 0
      %727 = vmatprep.subr.bf16.mxu0 0
      %728 = vmatpush2.bf16.msra.mxu0 0
      %729 = vmatprep.mubr.bf16.mxu0 0
      %730 = vmatmul.mubr.bf16.gmra.mxu0 %v689
      %v731 = vpop.f32.mrf.mxu0
      %v732 = vadd.f32 %v673, %v731
      %v733 = vpop.f32.mrf.mxu0
      %v734 = vadd.f32 %v675, %v733
      %v735 = vpop.f32.mrf.mxu0
      %v736 = vpop.f32.mrf.mxu0
      %737 = vdwg.mxu0
      %v738 = vld [vmem:[%s328] sm:$0x3f]
      %s739 = scalar_lea.vmem %s332, 28
      %v740 = vld [vmem:[%s739] sm:$0xf]
      %v742 = vcombine.high %v738, %v738
      %v744 = vunpack.c.l.s4 1983009808
      %v745 = vunpack.c.0.s8 %v744
      %v746 = vlaneseq
      %v747 = vshrl.u32 %v746, 7
      %v748 = vsub.s32 %v745, %v747
      %v749 = vrot.slane %v738, %v748
      %v751 = vunpack.c.l.s4 1983009808
      %v752 = vunpack.c.0.s8 %v751
      %v753 = vlaneseq
      %v754 = vshrl.u32 %v753, 7
      %v755 = vsub.s32 %v752, %v754
      %v756 = vrot.slane %v742, %v755
      %v757 = vcombine.high %v749, %v749
      %758 = vrot.lane.b32.xlu0 %v749, 80
      %v759 = vpop.permute.xlu0 %758
      %760 = vrot.lane.b32.xlu0 %v757, 80
      %v761 = vpop.permute.xlu0 %760
      %762 = vrot.lane.b32.xlu0 %v756, 80
      %v763 = vpop.permute.xlu0 %762
      %vm764 = vcmask 654336
      %v765 = vsel %vm764, %v759, %v761
      %v766 = vsel %vm764, %v761, %v763
      %v768 = vsel %vm390, %v740, 0
      %v771 = vsel %vm394, %v765, 0
      %v774 = vsel %vm394, %v766, 0
      %776 = vmatprep.subr.bf16.mxu0 0
      %777 = vmatpush1.bf16.msra.mxu0 0
      %778 = vmatprep.subr.bf16.mxu0 0
      %779 = vmatpush1.bf16.msra.mxu0 0
      %780 = vmatprep.subr.bf16.mxu0 0
      %781 = vmatpush1.bf16.msra.mxu0 0
      %782 = vmatprep.subr.bf16.mxu0 0
      %783 = vmatpush1.bf16.msra.mxu0 0
      %784 = vmatprep.subr.bf16.mxu0 0
      %785 = vmatpush1.bf16.msra.mxu0 0
      %786 = vmatprep.subr.bf16.mxu0 0
      %787 = vmatpush1.bf16.msra.mxu0 0
      %788 = vmatprep.subr.bf16.mxu0 0
      %789 = vmatpush1.bf16.msra.mxu0 0
      %790 = vmatprep.subr.bf16.mxu0 %v774
      %791 = vmatpush1.bf16.msra.mxu0 %v771
      %792 = vmatprep.subr.bf16.mxu0 0
      %793 = vmatpush2.bf16.msra.mxu0 0
      %794 = vmatprep.subr.bf16.mxu0 0
      %795 = vmatpush2.bf16.msra.mxu0 0
      %796 = vmatprep.subr.bf16.mxu0 0
      %797 = vmatpush2.bf16.msra.mxu0 0
      %798 = vmatprep.subr.bf16.mxu0 0
      %799 = vmatpush2.bf16.msra.mxu0 0
      %800 = vmatprep.subr.bf16.mxu0 0
      %801 = vmatpush2.bf16.msra.mxu0 0
      %802 = vmatprep.subr.bf16.mxu0 0
      %803 = vmatpush2.bf16.msra.mxu0 0
      %804 = vmatprep.subr.bf16.mxu0 0
      %805 = vmatpush2.bf16.msra.mxu0 0
      %806 = vmatprep.subr.bf16.mxu0 0
      %807 = vmatpush2.bf16.msra.mxu0 0
      %808 = vmatprep.mubr.bf16.mxu0 0
      %809 = vmatmul.mubr.bf16.gmra.mxu0 %v768
      %v810 = vpop.f32.mrf.mxu0
      %v811 = vadd.f32 0.0, %v810
      %v812 = vpop.f32.mrf.mxu0
      %v813 = vadd.f32 0.0, %v812
      %v814 = vpop.f32.mrf.mxu0
      %v815 = vpop.f32.mrf.mxu0
      %816 = vdwg.mxu0
      %v817 = vadd.f32 %v732, %v811
      %v818 = vadd.f32 %v734, %v813
      %v819 = vadd.f32 %v596, %v817
      %v820 = vadd.f32 %v597, %v818
      %v821 = vld [vmem:[%s328] sm:$0x3f]
      %s822 = scalar_lea.vmem %s332, 8
      %v823 = vld [vmem:[%s822] sm:$0xf]
      %s824 = scalar_lea.vmem %s332, 20
      %v825 = vld [vmem:[%s824] sm:$0xf]
      %v827 = vcombine.high %v821, %v821
      %v829 = vunpack.c.l.s4 1983009808
      %v830 = vunpack.c.0.s8 %v829
      %v831 = vlaneseq
      %v832 = vshrl.u32 %v831, 7
      %v833 = vsub.s32 %v830, %v832
      %v834 = vrot.slane %v821, %v833
      %v836 = vunpack.c.l.s4 1983009808
      %v837 = vunpack.c.0.s8 %v836
      %v838 = vlaneseq
      %v839 = vshrl.u32 %v838, 7
      %v840 = vsub.s32 %v837, %v839
      %v841 = vrot.slane %v827, %v840
      %v842 = vcombine.high %v834, %v834
      %843 = vrot.lane.b32.xlu0 %v834, 95
      %v844 = vpop.permute.xlu0 %843
      %845 = vrot.lane.b32.xlu0 %v842, 95
      %v846 = vpop.permute.xlu0 %845
      %847 = vrot.lane.b32.xlu0 %v841, 95
      %v848 = vpop.permute.xlu0 %847
      %vm849 = vcmask 777216
      %v850 = vsel %vm849, %v844, %v846
      %v851 = vsel %vm849, %v846, %v848
      %v853 = vsel %vm390, %v825, 0
      %v856 = vsel %vm394, %v850, 0
      %v859 = vsel %vm394, %v851, 0
      %861 = vmatprep.subr.bf16.mxu0 0
      %862 = vmatpush1.bf16.msra.mxu0 0
      %863 = vmatprep.subr.bf16.mxu0 0
      %864 = vmatpush1.bf16.msra.mxu0 0
      %865 = vmatprep.subr.bf16.mxu0 0
      %866 = vmatpush1.bf16.msra.mxu0 0
      %867 = vmatprep.subr.bf16.mxu0 0
      %868 = vmatpush1.bf16.msra.mxu0 0
      %869 = vmatprep.subr.bf16.mxu0 0
      %870 = vmatpush1.bf16.msra.mxu0 0
      %871 = vmatprep.subr.bf16.mxu0 0
      %872 = vmatpush1.bf16.msra.mxu0 0
      %873 = vmatprep.subr.bf16.mxu0 0
      %874 = vmatpush1.bf16.msra.mxu0 0
      %875 = vmatprep.subr.bf16.mxu0 %v859
      %876 = vmatpush1.bf16.msra.mxu0 %v856
      %877 = vmatprep.subr.bf16.mxu0 0
      %878 = vmatpush2.bf16.msra.mxu0 0
      %879 = vmatprep.subr.bf16.mxu0 0
      %880 = vmatpush2.bf16.msra.mxu0 0
      %881 = vmatprep.subr.bf16.mxu0 0
      %882 = vmatpush2.bf16.msra.mxu0 0
      %883 = vmatprep.subr.bf16.mxu0 0
      %884 = vmatpush2.bf16.msra.mxu0 0
      %885 = vmatprep.subr.bf16.mxu0 0
      %886 = vmatpush2.bf16.msra.mxu0 0
      %887 = vmatprep.subr.bf16.mxu0 0
      %888 = vmatpush2.bf16.msra.mxu0 0
      %889 = vmatprep.subr.bf16.mxu0 0
      %890 = vmatpush2.bf16.msra.mxu0 0
      %891 = vmatprep.subr.bf16.mxu0 0
      %892 = vmatpush2.bf16.msra.mxu0 0
      %893 = vmatprep.mubr.bf16.mxu0 0
      %894 = vmatmul.mubr.bf16.gmra.mxu0 %v853
      %v895 = vpop.f32.mrf.mxu0
      %v896 = vadd.f32 0.0, %v895
      %v897 = vpop.f32.mrf.mxu0
      %v898 = vadd.f32 0.0, %v897
      %v899 = vpop.f32.mrf.mxu0
      %v900 = vpop.f32.mrf.mxu0
      %901 = vdwg.mxu0
      %902 = vrot.lane.b32.xlu0 %v834, 111
      %v903 = vpop.permute.xlu0 %902
      %904 = vrot.lane.b32.xlu0 %v842, 111
      %v905 = vpop.permute.xlu0 %904
      %906 = vrot.lane.b32.xlu0 %v841, 111
      %v907 = vpop.permute.xlu0 %906
      %vm908 = vcmask 908288
      %v909 = vsel %vm908, %v903, %v905
      %v910 = vsel %vm908, %v905, %v907
      %v912 = vsel %vm390, %v823, 0
      %v915 = vsel %vm394, %v909, 0
      %v918 = vsel %vm394, %v910, 0
      %920 = vmatprep.subr.bf16.mxu0 0
      %921 = vmatpush1.bf16.msra.mxu0 0
      %922 = vmatprep.subr.bf16.mxu0 0
      %923 = vmatpush1.bf16.msra.mxu0 0
      %924 = vmatprep.subr.bf16.mxu0 0
      %925 = vmatpush1.bf16.msra.mxu0 0
      %926 = vmatprep.subr.bf16.mxu0 0
      %927 = vmatpush1.bf16.msra.mxu0 0
      %928 = vmatprep.subr.bf16.mxu0 0
      %929 = vmatpush1.bf16.msra.mxu0 0
      %930 = vmatprep.subr.bf16.mxu0 0
      %931 = vmatpush1.bf16.msra.mxu0 0
      %932 = vmatprep.subr.bf16.mxu0 0
      %933 = vmatpush1.bf16.msra.mxu0 0
      %934 = vmatprep.subr.bf16.mxu0 %v918
      %935 = vmatpush1.bf16.msra.mxu0 %v915
      %936 = vmatprep.subr.bf16.mxu0 0
      %937 = vmatpush2.bf16.msra.mxu0 0
      %938 = vmatprep.subr.bf16.mxu0 0
      %939 = vmatpush2.bf16.msra.mxu0 0
      %940 = vmatprep.subr.bf16.mxu0 0
      %941 = vmatpush2.bf16.msra.mxu0 0
      %942 = vmatprep.subr.bf16.mxu0 0
      %943 = vmatpush2.bf16.msra.mxu0 0
      %944 = vmatprep.subr.bf16.mxu0 0
      %945 = vmatpush2.bf16.msra.mxu0 0
      %946 = vmatprep.subr.bf16.mxu0 0
      %947 = vmatpush2.bf16.msra.mxu0 0
      %948 = vmatprep.subr.bf16.mxu0 0
      %949 = vmatpush2.bf16.msra.mxu0 0
      %950 = vmatprep.subr.bf16.mxu0 0
      %951 = vmatpush2.bf16.msra.mxu0 0
      %952 = vmatprep.mubr.bf16.mxu0 0
      %953 = vmatmul.mubr.bf16.gmra.mxu0 %v912
      %v954 = vpop.f32.mrf.mxu0
      %v955 = vadd.f32 %v896, %v954
      %v956 = vpop.f32.mrf.mxu0
      %v957 = vadd.f32 %v898, %v956
      %v958 = vpop.f32.mrf.mxu0
      %v959 = vpop.f32.mrf.mxu0
      %960 = vdwg.mxu0
      %v961 = vld [vmem:[%s328] sm:$0x3f]
      %s962 = scalar_lea.vmem %s332, 32
      %v963 = vld [vmem:[%s962] sm:$0xf]
      %v965 = vcombine.high %v961, %v961
      %v967 = vunpack.c.l.s4 1983009808
      %v968 = vunpack.c.0.s8 %v967
      %v969 = vlaneseq
      %v970 = vshrl.u32 %v969, 7
      %v971 = vsub.s32 %v968, %v970
      %v972 = vrot.slane %v961, %v971
      %v974 = vunpack.c.l.s4 1983009808
      %v975 = vunpack.c.0.s8 %v974
      %v976 = vlaneseq
      %v977 = vshrl.u32 %v976, 7
      %v978 = vsub.s32 %v975, %v977
      %v979 = vrot.slane %v965, %v978
      %v980 = vcombine.high %v972, %v972
      %981 = vrot.lane.b32.xlu0 %v972, 79
      %v982 = vpop.permute.xlu0 %981
      %983 = vrot.lane.b32.xlu0 %v980, 79
      %v984 = vpop.permute.xlu0 %983
      %985 = vrot.lane.b32.xlu0 %v979, 79
      %v986 = vpop.permute.xlu0 %985
      %vm987 = vcmask 646144
      %v988 = vsel %vm987, %v982, %v984
      %v989 = vsel %vm987, %v984, %v986
      %v991 = vsel %vm390, %v963, 0
      %v994 = vsel %vm394, %v988, 0
      %v997 = vsel %vm394, %v989, 0
      %999 = vmatprep.subr.bf16.mxu0 0
      %1000 = vmatpush1.bf16.msra.mxu0 0
      %1001 = vmatprep.subr.bf16.mxu0 0
      %1002 = vmatpush1.bf16.msra.mxu0 0
      %1003 = vmatprep.subr.bf16.mxu0 0
      %1004 = vmatpush1.bf16.msra.mxu0 0
      %1005 = vmatprep.subr.bf16.mxu0 0
      %1006 = vmatpush1.bf16.msra.mxu0 0
      %1007 = vmatprep.subr.bf16.mxu0 0
      %1008 = vmatpush1.bf16.msra.mxu0 0
      %1009 = vmatprep.subr.bf16.mxu0 0
      %1010 = vmatpush1.bf16.msra.mxu0 0
      %1011 = vmatprep.subr.bf16.mxu0 0
      %1012 = vmatpush1.bf16.msra.mxu0 0
      %1013 = vmatprep.subr.bf16.mxu0 %v997
      %1014 = vmatpush1.bf16.msra.mxu0 %v994
      %1015 = vmatprep.subr.bf16.mxu0 0
      %1016 = vmatpush2.bf16.msra.mxu0 0
      %1017 = vmatprep.subr.bf16.mxu0 0
      %1018 = vmatpush2.bf16.msra.mxu0 0
      %1019 = vmatprep.subr.bf16.mxu0 0
      %1020 = vmatpush2.bf16.msra.mxu0 0
      %1021 = vmatprep.subr.bf16.mxu0 0
      %1022 = vmatpush2.bf16.msra.mxu0 0
      %1023 = vmatprep.subr.bf16.mxu0 0
      %1024 = vmatpush2.bf16.msra.mxu0 0
      %1025 = vmatprep.subr.bf16.mxu0 0
      %1026 = vmatpush2.bf16.msra.mxu0 0
      %1027 = vmatprep.subr.bf16.mxu0 0
      %1028 = vmatpush2.bf16.msra.mxu0 0
      %1029 = vmatprep.subr.bf16.mxu0 0
      %1030 = vmatpush2.bf16.msra.mxu0 0
      %1031 = vmatprep.mubr.bf16.mxu0 0
      %1032 = vmatmul.mubr.bf16.gmra.mxu0 %v991
      %v1033 = vpop.f32.mrf.mxu0
      %v1034 = vadd.f32 0.0, %v1033
      %v1035 = vpop.f32.mrf.mxu0
      %v1036 = vadd.f32 0.0, %v1035
      %v1037 = vpop.f32.mrf.mxu0
      %v1038 = vpop.f32.mrf.mxu0
      %1039 = vdwg.mxu0
      %v1040 = vadd.f32 %v955, %v1034
      %v1041 = vadd.f32 %v957, %v1036
      %s1042 = scalar_lea.vmem %s3, 1
      %v1043 = vld [vmem:[%s1042] ss:$2 sm:$0x3]
      %v1045 = vlaneseq
      %v1046 = vshrl.u32 %v1045, 7
      %v1047 = vsub.s32 0, %v1046
      %v1048 = vrot.slane %v1043, %v1047
      %v1049 = vlaneseq
      %v1050 = vshrl.u32 %v1049, 7
      %v1051 = vsub.s32 1, %v1050
      %v1052 = vrot.slane %v1043, %v1051
      %v1055 = vmul.f32 %v1040, %v1048
      %v1056 = vmul.f32 %v1041, %v1052
      %v1057 = vadd.f32 %v819, %v1055
      %v1058 = vadd.f32 %v820, %v1056
      %p1059 = scmp.eq.s32.totalorder %s23, 0
      // Predicated region
      $region45: #{in_conv_forward.2} parent=43 // pred_check
        %p1060 = pneg %p1059
      $region46: #{in_conv_forward.2} parent=43 // pred_check_branch
        %1062 = sbr.rel (%p1060) target = $region48
      $region47: #{in_conv_forward.2} parent=43 // pred_region
        %p1063 = scmp.eq.s32.totalorder %s24, 0
        // Predicated region
        $region49: #{in_conv_forward.2} parent=47 // pred_check
          %p1064 = pneg %p1063
        $region50: #{in_conv_forward.2} parent=47 // pred_check_branch
          %1066 = sbr.rel (%p1064) target = $region52
        $region51: #{in_conv_forward.2} parent=47 // pred_region
          %vm1067 = vcmask 7168
          %1068 = vst.msk [vmem:[#allocation2] sm:$0xff] %vm1067, 0.0
          %1069 = vst.msk [vmem:[#allocation3] sm:$0xff] %vm1067, 0.0
        $region52: #{in_conv_forward.2} parent=47 // pred_fallthru
          _
        %v1070 = vld [vmem:[#allocation2] sm:$0xff]
        %v1071 = vadd.f32 %v1057, %v1058
        %1072 = vadd.xlane.f32.xlu0 %v1071
        %v1073 = vpop.xlane.xlu0 %1072
        %v1074 = vadd.f32 %v1070, %v1073
        %vm1075 = vcmask 7168
        %1076 = vst.msk [vmem:[#allocation2] sm:$0xff] %vm1075, %v1074
        %v1077 = vld [vmem:[#allocation3] sm:$0xff]
        %v1078 = vmul.f32 %v1057, %v1057
        %v1079 = vmul.f32 %v1058, %v1058
        %v1080 = vadd.f32 %v1078, %v1079
        %1081 = vadd.xlane.f32.xlu0 %v1080
        %v1082 = vpop.xlane.xlu0 %1081
        %v1083 = vadd.f32 %v1077, %v1082
        %1084 = vst.msk [vmem:[#allocation3] sm:$0xff] %vm1075, %v1083
      $region48: #{in_conv_forward.2} parent=43 // pred_fallthru
        _
      %p1085 = scmp.eq.s32.totalorder %s23, 1
      // Predicated region
      $region53: #{in_conv_forward.2} parent=43 // pred_check
        %p1086 = pneg %p1085
      $region54: #{in_conv_forward.2} parent=43 // pred_check_branch
        %1088 = sbr.rel (%p1086) target = $region56
      $region55: #{in_conv_forward.2} parent=43 // pred_region
        %p1089 = scmp.eq.s32.totalorder %s24, 0
        // Predicated region
        $region57: #{in_conv_forward.2} parent=55 // pred_check
          %p1090 = pneg %p1089
        $region58: #{in_conv_forward.2} parent=55 // pred_check_branch
          %1092 = sbr.rel (%p1090) target = $region60
        $region59: #{in_conv_forward.2} parent=55 // pred_region
          %v1093 = vld [vmem:[#allocation2] sm:$0xff]
          %v1094 = vmul.f32 %v1093, 0.001953125
          %v1095 = vld [vmem:[#allocation3] sm:$0xff]
          %v1096 = vmul.f32 %v1095, 0.001953125
          %v1097 = vmul.f32 %v1094, %v1094
          %v1098 = vsub.f32 %v1096, %v1097
          %v1099 = vmax.f32 %v1098, 0.0
          %v1100 = vadd.f32 %v1099, 1e-05
          %v1101 = vrsqrt.pop %v1100
          %v1102 = vld [vmem:[%s341] sm:$0xff]
          %v1103 = vmul.f32 %v1102, %v1101
          %vm1104 = vcmask 7168
          %1105 = vst.msk [vmem:[#allocation4] sm:$0xff] %vm1104, %v1103
          %v1106 = vld [vmem:[%s345] sm:$0xff]
          %v1107 = vld [vmem:[%s341] sm:$0xff]
          %v1108 = vmul.f32 %v1094, %v1107
          %v1109 = vmul.f32 %v1108, %v1101
          %v1110 = vsub.f32 %v1106, %v1109
          %1111 = vst.msk [vmem:[#allocation5] sm:$0xff] %vm1104, %v1110
        $region60: #{in_conv_forward.2} parent=55 // pred_fallthru
          _
        %v1112 = vld [vmem:[#allocation4] sm:$0xff]
        %1114 = vset.pattern.permute.xlu0 0
        %1115 = vperm.xlu0 %1114, %v1112
        %v1116 = vpop.permute.xlu0 %1115
        %v1118 = vmul.f32 %v1057, %v1116
        %v1119 = vmul.f32 %v1058, %v1116
        %v1120 = vld [vmem:[#allocation5] sm:$0xff]
        %1122 = vset.pattern.permute.xlu0 0
        %1123 = vperm.xlu0 %1122, %v1120
        %v1124 = vpop.permute.xlu0 %1123
        %v1126 = vadd.f32 %v1118, %v1124
        %v1127 = vadd.f32 %v1119, %v1124
        %v1128 = vmax.f32 %v1126, 0.0
        %v1129 = vmax.f32 %v1127, 0.0
        %v1130 = vpack.c.bf16 %v1128, %v1128
        %v1131 = vpack.c.bf16 %v1129, %v1129
        %1134 = vrot.lane.b32.xlu0 %v1130, 32
        %v1135 = vpop.permute.xlu0 %1134
        %1136 = vrot.lane.b32.xlu0 %v1131, 32
        %v1137 = vpop.permute.xlu0 %1136
        %vm1138 = vcmask 261120
        %v1139 = vsel %vm1138, %v1135, %v1137
        %vm1140 = vcmask 261120
        %v1143 = vsel %vm1140, 0, %v1135
        %v1145 = vsel %vm1140, %v1137, 0
        %v1148 = vunpack.c.l.b16 %v1143
        %v1149 = vunpack.c.l.b16 %v1139
        %v1150 = vunpack.c.l.b16 %v1145
        %v1151 = vpack.c.b16 %v1149, %v1148
        %v1152 = vpack.c.b16 %v1150, %v1150
        %1155 = vst [vmem:[%s355] sm:$0xff] %v1151
        %vm1156 = vcmask 519168
        %1157 = vst.msk [vmem:[%s355 + $0x8] sm:$0xf] %vm1156, %v1152
      $region56: #{in_conv_forward.2} parent=43 // pred_fallthru
        _
      %s1158 = smul.u32 %s24, %s23
      %p1159 = scmp.lt.s32.totalorder %s1158, 1
      %s1160 = scalar_select %p1159, %s1158, 1
      %p1161 = scmp.lt.s32.totalorder %s22, 0
      %s1162 = scalar_select %p1161, %s22, 0
      %s1163 = smul.addr %s1162, 3
      %s1164 = smul.addr %s1160, 3
      %s1165 = sadd.s32 %s1163, %s1164
      %s1166 = smul.addr %s1165, 4
      %s1167 = scalar_lea.vmem %s6, %s1166
      // Predicated region
      $region61: #{in_conv_forward.2} parent=43 // pred_check
        %p1168 = pneg %p209
      $region62: #{in_conv_forward.2} parent=43 // pred_check_branch
        %1170 = sbr.rel (%p1168) target = $region64
      $region63: #{in_conv_forward.2} parent=43 // pred_region
        %s1171 = smul.u32 %s24, %s23
      $region64: #{in_conv_forward.2} parent=43 // pred_fallthru
        _
    $region44: #{in_conv_forward.2} parent=5 // pred_fallthru
      _
    %p1172 = scmp.le.s32.totalorder 2, %s12
    // Predicated region
    $region65: #{in_conv_forward.2} parent=5 // pred_check
      %p1173 = pneg %p1172
    $region66: #{in_conv_forward.2} parent=5 // pred_check_branch
      %1175 = sbr.rel (%p1173) target = $region68
    $region67: #{in_conv_forward.2} parent=5 // pred_region
      %s1176 = ssub.s32 %s12, 2
      // Predicated region
      $region69: #{in_conv_forward.2} parent=67 // pred_check
        %p1177 = pneg %p215
      $region70: #{in_conv_forward.2} parent=67 // pred_check_branch
        %1179 = sbr.rel (%p1177) target = $region72
      $region71: #{in_conv_forward.2} parent=67 // pred_region
        %s1180 = smul.u32 %s27, %s26
        %p1181 = scmp.lt.s32.totalorder %s1180, 1
        %s1182 = scalar_select %p1181, %s1180, 1
        %p1183 = scmp.lt.s32.totalorder %s25, 0
        %s1184 = scalar_select %p1183, %s25, 0
        %s1185 = smul.addr %s1184, 3
        %s1186 = smul.addr %s1182, 3
        %s1187 = sadd.s32 %s1185, %s1186
        %s1188 = smul.addr %s1187, 4
        %s1189 = scalar_lea.vmem %s6, %s1188
      $region72: #{in_conv_forward.2} parent=67 // pred_fallthru
        _
    $region68: #{in_conv_forward.2} parent=5 // pred_fallthru
      _
  $region6: #{in_conv_forward.2} parent=0 // loop_footer
    %s16 = sadd.s32 1, %s12
  $region7: #{in_conv_forward.2} parent=0 // loop_footer_branch
    %11 = sbr.rel target = $region3
  $region8: #{in_conv_forward.2} parent=0 // loop_exit
    _

</llo_original>
